<compile_context>
chip_gen: v6e
topology: v6e:2x2x1
jax: 0.10.0
libtpu: 0.0.40
codegen_flags: <defaults>
</compile_context>

<pallas_src>
import numpy as np
import jax
import jax.numpy as jnp
from jax.experimental import pallas as pl
from jax.experimental.pallas import tpu as pltpu

HIDDEN = 128            # nn.Linear(heads, 128) / LayerNorm(128)
LN_EPS = 1e-5
MAX_TILE_E = 4096       # edges per grid step (upper bound)
LANE = 128
GELU_APPROXIMATE = True # tanh GELU on the EUP; set False for exact erf
_PREC = jax.lax.Precision.HIGHEST


# ----------------------------------------------------------------------------
# Pallas kernel: per-edge MLP in edge-on-lanes layout
#   x_t  : [H, TE]        (edges on lanes)
#   w1_t : [128, H]       dense.weight
#   b1   : [128, 1]       dense.bias (column)
#   rw   : [2, 128]       row0 = ones, row1 = w2_eff - mean(w2_eff)
#   c    : [1]  (SMEM)    beta . w2 + b2
#   out  : [1, TE]        lane-dense per-edge scalars
# ----------------------------------------------------------------------------
def _distance_head_kernel(xt_ref, w1t_ref, b1_ref, rw_ref, c_ref, o_ref):
    xt = xt_ref[...].astype(jnp.float32)                               # [H, TE]
    # dense: [128, H] @ [H, TE] + b1  -> features on sublanes, edges on lanes
    h = jnp.dot(w1t_ref[...], xt, precision=_PREC,
                preferred_element_type=jnp.float32) + b1_ref[...]      # [128, TE]
    # activation: tanh-approx GELU -> transcendental handled by the EUP slot
    h = jax.nn.gelu(h, approximate=GELU_APPROXIMATE)
    # Reductions over the 128 features via one small MXU matmul:
    #   red[0] = sum_k h_k            (for mu / var)
    #   red[1] = sum_k h_k * (w2_eff_k - mean(w2_eff))   (folded LN+out_proj)
    red = jnp.dot(rw_ref[...], h, precision=_PREC,
                  preferred_element_type=jnp.float32)                  # [2, TE]
    s2 = jnp.sum(h * h, axis=0, keepdims=True)                         # [1, TE]
    mu = red[0:1, :] * (1.0 / HIDDEN)
    var = s2 * (1.0 / HIDDEN) - mu * mu                                # one-pass
    out = red[1:2, :] * jax.lax.rsqrt(var + LN_EPS) + c_ref[0]         # [1, TE]
    o_ref[...] = out.astype(o_ref.dtype)


def _choose_tile(n_edges):
    """Multiple of 128, <= MAX_TILE_E.  Small inputs -> single block; mid-size
    inputs -> >=4 blocks (>=2 per v7x TensorCore); large inputs -> MAX_TILE_E."""
    cover = LANE * pl.cdiv(max(n_edges, 1), LANE)
    if n_edges <= 4 * LANE:
        return min(cover, MAX_TILE_E)
    quarter = LANE * max(1, n_edges // (4 * LANE))
    return min(MAX_TILE_E, quarter)


def _distance_head_mlp_impl(x, w1, b1, gamma, beta, w2, b2):
    """x: [E, heads] float32 -> [E, 1] float32 (dense->gelu->LN->out_proj)."""
    E, H = x.shape
    if E == 0:
        return jnp.zeros((0, 1), jnp.float32)

    # Fold LayerNorm affine + out_proj (exact):
    #   (hn*gamma + beta) @ w2 + b2 == hn @ (gamma*w2) + (beta @ w2 + b2)
    # and center w2_eff so the S*mu term disappears from the kernel.
    w2_col = w2.reshape(HIDDEN)
    w2_eff = gamma * w2_col
    wc = w2_eff - jnp.mean(w2_eff)                                   # centered
    rw = jnp.stack([jnp.ones((HIDDEN,), jnp.float32), wc], axis=0)   # [2, 128]
    c = (jnp.dot(beta, w2_col, precision=_PREC) + b2.reshape(())).reshape(1)

    w1_t = jnp.transpose(w1)                    # [128, H]
    b1_col = b1.reshape(HIDDEN, 1)              # [128, 1]
    x_t = jnp.transpose(x).astype(jnp.float32)  # [H, E]  edges on lanes

    tile = _choose_tile(E)
    n_blocks = pl.cdiv(E, tile)

    out = pl.pallas_call(
        _distance_head_kernel,
        out_shape=jax.ShapeDtypeStruct((1, n_blocks * tile), jnp.float32),
        grid=(n_blocks,),
        in_specs=[
            pl.BlockSpec((H, tile), lambda i: (0, i)),             # x tile (ragged last ok)
            pl.BlockSpec((HIDDEN, H), lambda i: (0, 0)),           # dense.weight
            pl.BlockSpec((HIDDEN, 1), lambda i: (0, 0)),           # dense.bias column
            pl.BlockSpec((2, HIDDEN), lambda i: (0, 0)),           # [ones; centered w2_eff]
            pl.BlockSpec(memory_space=pltpu.MemorySpace.SMEM),     # fused scalar bias c
        ],
        out_specs=pl.BlockSpec((1, tile), lambda i: (0, i)),       # lane-dense output
        compiler_params=pltpu.CompilerParams(
            dimension_semantics=("parallel",),
            vmem_limit_bytes=32 * 1024 * 1024),
    )(x_t, w1_t, b1_col, rw, c)

    return out[0, :E].reshape(E, 1)


distance_head_mlp = jax.jit(_distance_head_mlp_impl)


# ----------------------------------------------------------------------------
# Graph glue (host / numpy): remove_self_loops, to_undirected(reduce='mean')
# ----------------------------------------------------------------------------
def remove_self_loops_np(edge_index, edge_attr):
    mask = edge_index[0] != edge_index[1]
    return edge_index[:, mask], edge_attr[mask]


def to_undirected_mean_np(edge_index, edge_attr):
    # append reversed edges, then coalesce duplicate (row, col) pairs with mean
    ei = np.concatenate([edge_index, edge_index[::-1]], axis=1)
    ea = np.concatenate([edge_attr, edge_attr], axis=0)
    num_nodes = int(ei.max()) + 1
    keys = ei[0].astype(np.int64) * num_nodes + ei[1].astype(np.int64)
    uniq, inv, counts = np.unique(keys, return_inverse=True, return_counts=True)
    sums = np.zeros((uniq.shape[0], ea.shape[1]), dtype=np.float64)
    np.add.at(sums, inv, ea.astype(np.float64))
    mean = (sums / counts[:, None]).astype(edge_attr.dtype)
    new_ei = np.stack([uniq // num_nodes, uniq % num_nodes]).astype(edge_index.dtype)
    return new_ei, mean


def distance_head_forward(dist, edge_index_pe, params):
    """Full DistanceHead.forward: returns (dist.squeeze(), edge_index)."""
    edge_index, dist = remove_self_loops_np(np.asarray(edge_index_pe),
                                            np.asarray(dist))
    out = distance_head_mlp(jnp.asarray(dist), *params)          # [E', 1]
    out = np.asarray(jax.block_until_ready(out))
    edge_index, out = to_undirected_mean_np(edge_index, out)
    return np.squeeze(out), edge_index


# ----------------------------------------------------------------------------
if __name__ == "__main__":
    heads = 16
    num_nodes = 8
    num_edges = 40

    key = jax.random.PRNGKey(0)
    (k_dist, k_src, k_dst, kw1, kb1, kg, kbe, kw2, kb2, k_big) = jax.random.split(key, 10)

    # deterministic parameters (shapes from __init__)
    w1 = jax.random.normal(kw1, (heads, HIDDEN), jnp.float32) * 0.1      # dense.weight^T
    b1 = jax.random.normal(kb1, (HIDDEN,), jnp.float32) * 0.1            # dense.bias
    gamma = 1.0 + 0.1 * jax.random.normal(kg, (HIDDEN,), jnp.float32)    # layer_norm.weight
    beta = 0.1 * jax.random.normal(kbe, (HIDDEN,), jnp.float32)          # layer_norm.bias
    w2 = jax.random.normal(kw2, (HIDDEN, 1), jnp.float32) * 0.1          # out_proj.weight^T
    b2 = jax.random.normal(kb2, (1,), jnp.float32) * 0.1                 # out_proj.bias
    params = (w1, b1, gamma, beta, w2, b2)

    def mlp_ref(x):
        h = jnp.dot(x, w1, precision=_PREC) + b1
        h = jax.nn.gelu(h, approximate=GELU_APPROXIMATE)
        mu = jnp.mean(h, axis=-1, keepdims=True)
        var = jnp.mean((h - mu) ** 2, axis=-1, keepdims=True)
        hn = (h - mu) * jax.lax.rsqrt(var + LN_EPS) * gamma + beta
        return jnp.dot(hn, w2, precision=_PREC) + b2

    # --- small end-to-end graph example (matches the module's forward) ------
    dist = jax.random.normal(k_dist, (num_edges, heads), jnp.float32)
    src = np.asarray(jax.random.randint(k_src, (num_edges,), 0, num_nodes))
    dst = np.asarray(jax.random.randint(k_dst, (num_edges,), 0, num_nodes))
    edge_index_pe = np.stack([src, dst]).astype(np.int32)

    out_attr, out_ei = distance_head_forward(dist, edge_index_pe, params)
    assert out_attr.shape[0] == out_ei.shape[1]

    # sanity check the Pallas MLP against the plain-JAX reference
    ei_r, d_r = remove_self_loops_np(edge_index_pe, np.asarray(dist))
    got = jax.block_until_ready(distance_head_mlp(jnp.asarray(d_r), *params))
    np.testing.assert_allclose(np.asarray(got),
                               np.asarray(mlp_ref(jnp.asarray(d_r))),
                               rtol=1e-3, atol=1e-3)

    # --- larger case: multi-block grid + ragged last input block ------------
    x_big = jax.random.normal(k_big, (1000, heads), jnp.float32)
    got_big = jax.block_until_ready(distance_head_mlp(x_big, *params))
    np.testing.assert_allclose(np.asarray(got_big), np.asarray(mlp_ref(x_big)),
                               rtol=1e-3, atol=1e-3)

    print("KERNEL_OK")
</pallas_src>

<mosaic_0001>
module attributes {stable_mosaic.version = 11 : i64} {
  func.func @_distance_head_kernel(%arg0: i32, %arg1: memref<16x128xf32, #tpu.memory_space<vmem>>, %arg2: memref<128x16xf32, #tpu.memory_space<vmem>>, %arg3: memref<128x1xf32, #tpu.memory_space<vmem>>, %arg4: memref<2x128xf32, #tpu.memory_space<vmem>>, %arg5: memref<1xf32, #tpu.memory_space<smem>>, %arg6: memref<1x128xf32, #tpu.memory_space<vmem>>) attributes {dimension_semantics = [#tpu.dimension_semantics<parallel>], iteration_bounds = array<i64: 1>, scalar_prefetch = 0 : i64, scratch_operands = 0 : i64, tpu.core_type = #tpu.core_type<tc>, window_params = [{transform_indices = @transform_0, window_bounds = array<i64: 16, 128>}, {pipeline_mode = #tpu.pipeline_mode<synchronous>, transform_indices = @transform_1, window_bounds = array<i64: 128, 16>}, {pipeline_mode = #tpu.pipeline_mode<synchronous>, transform_indices = @transform_2, window_bounds = array<i64: 128, 1>}, {pipeline_mode = #tpu.pipeline_mode<synchronous>, transform_indices = @transform_3, window_bounds = array<i64: 2, 128>}, {transform_indices = @transform_4, window_bounds = array<i64: 1>}, {transform_indices = @transform_5, window_bounds = array<i64: 1, 128>}]} {
    %c0 = arith.constant 0 : index
    %c0_0 = arith.constant 0 : index
    %0 = vector.load %arg1[%c0, %c0_0] : memref<16x128xf32, #tpu.memory_space<vmem>>, vector<16x128xf32>
    %c0_1 = arith.constant 0 : index
    %c0_2 = arith.constant 0 : index
    %1 = vector.load %arg2[%c0_1, %c0_2] : memref<128x16xf32, #tpu.memory_space<vmem>>, vector<128x16xf32>
    %cst = arith.constant dense<0.000000e+00> : vector<128x128xf32>
    %2 = tpu.matmul %1, %0, %cst {dimension_numbers = #tpu.dot_dimension_numbers<[1], [0], [0], [1], [0, 0, 1, 1], [], []>, precision = #tpu.contract_precision<fp32>} : vector<128x16xf32>, vector<16x128xf32>, vector<128x128xf32> -> vector<128x128xf32>
    %c0_3 = arith.constant 0 : index
    %c0_4 = arith.constant 0 : index
    %3 = vector.load %arg3[%c0_3, %c0_4] : memref<128x1xf32, #tpu.memory_space<vmem>>, vector<128x1xf32>
    %4 = vector.broadcast %3 : vector<128x1xf32> to vector<128x128xf32>
    %5 = arith.addf %2, %4 : vector<128x128xf32>
    %6 = arith.mulf %5, %5 : vector<128x128xf32>
    %7 = arith.mulf %5, %6 : vector<128x128xf32>
    %cst_5 = arith.constant 4.471500e-02 : f32
    %8 = vector.broadcast %cst_5 : f32 to vector<128x128xf32>
    %9 = arith.mulf %8, %7 : vector<128x128xf32>
    %10 = arith.addf %5, %9 : vector<128x128xf32>
    %cst_6 = arith.constant 0.797884583 : f32
    %11 = vector.broadcast %cst_6 : f32 to vector<128x128xf32>
    %12 = arith.mulf %11, %10 : vector<128x128xf32>
    %13 = math.tanh %12 : vector<128x128xf32>
    %cst_7 = arith.constant 1.000000e+00 : f32
    %14 = vector.broadcast %cst_7 : f32 to vector<128x128xf32>
    %15 = arith.addf %14, %13 : vector<128x128xf32>
    %cst_8 = arith.constant 5.000000e-01 : f32
    %16 = vector.broadcast %cst_8 : f32 to vector<128x128xf32>
    %17 = arith.mulf %16, %15 : vector<128x128xf32>
    %18 = arith.mulf %5, %17 : vector<128x128xf32>
    %c0_9 = arith.constant 0 : index
    %c0_10 = arith.constant 0 : index
    %19 = vector.load %arg4[%c0_9, %c0_10] : memref<2x128xf32, #tpu.memory_space<vmem>>, vector<2x128xf32>
    %cst_11 = arith.constant dense<0.000000e+00> : vector<2x128xf32>
    %20 = tpu.matmul %19, %18, %cst_11 {dimension_numbers = #tpu.dot_dimension_numbers<[1], [0], [0], [1], [0, 0, 1, 1], [], []>, precision = #tpu.contract_precision<fp32>} : vector<2x128xf32>, vector<128x128xf32>, vector<2x128xf32> -> vector<2x128xf32>
    %21 = arith.mulf %18, %18 : vector<128x128xf32>
    %cst_12 = arith.constant dense<0.000000e+00> : vector<128xf32>
    %22 = vector.multi_reduction <add>, %21, %cst_12 [0] : vector<128x128xf32> to vector<128xf32>
    %23 = vector.shape_cast %22 : vector<128xf32> to vector<1x128xf32>
    %24 = vector.extract_strided_slice %20 {offsets = [0, 0], sizes = [1, 128], strides = [1, 1]} : vector<2x128xf32> to vector<1x128xf32>
    %cst_13 = arith.constant 7.812500e-03 : f32
    %25 = vector.broadcast %cst_13 : f32 to vector<1x128xf32>
    %26 = arith.mulf %24, %25 : vector<1x128xf32>
    %cst_14 = arith.constant 7.812500e-03 : f32
    %27 = vector.broadcast %cst_14 : f32 to vector<1x128xf32>
    %28 = arith.mulf %23, %27 : vector<1x128xf32>
    %29 = arith.mulf %26, %26 : vector<1x128xf32>
    %30 = arith.subf %28, %29 : vector<1x128xf32>
    %31 = vector.extract_strided_slice %20 {offsets = [1, 0], sizes = [1, 128], strides = [1, 1]} : vector<2x128xf32> to vector<1x128xf32>
    %cst_15 = arith.constant 9.99999974E-6 : f32
    %32 = vector.broadcast %cst_15 : f32 to vector<1x128xf32>
    %33 = arith.addf %30, %32 : vector<1x128xf32>
    %34 = math.rsqrt %33 : vector<1x128xf32>
    %35 = arith.mulf %31, %34 : vector<1x128xf32>
    %c0_16 = arith.constant 0 : index
    %36 = memref.load %arg5[%c0_16] : memref<1xf32, #tpu.memory_space<smem>>
    %37 = vector.broadcast %36 : f32 to vector<1x128xf32>
    %38 = arith.addf %35, %37 : vector<1x128xf32>
    %c0_17 = arith.constant 0 : index
    %c0_18 = arith.constant 0 : index
    %39 = vector.load %arg6[%c0_17, %c0_18] : memref<1x128xf32, #tpu.memory_space<vmem>>, vector<1x128xf32>
    tpu.vector_store %arg6[%c0_17, %c0_18], %38 {strides = array<i32>} : memref<1x128xf32, #tpu.memory_space<vmem>>, vector<1x128xf32>,
    return
  }
  func.func @transform_0(%arg0: i32) -> (i32, i32) {
    %c0_i32 = arith.constant 0 : i32
    %c0_i32_0 = arith.constant 0 : i32
    return %c0_i32, %arg0 : i32, i32
  }
  func.func @transform_1(%arg0: i32) -> (i32, i32) {
    %c0_i32 = arith.constant 0 : i32
    %c0_i32_0 = arith.constant 0 : i32
    %c0_i32_1 = arith.constant 0 : i32
    return %c0_i32, %c0_i32_0 : i32, i32
  }
  func.func @transform_2(%arg0: i32) -> (i32, i32) {
    %c0_i32 = arith.constant 0 : i32
    %c0_i32_0 = arith.constant 0 : i32
    %c0_i32_1 = arith.constant 0 : i32
    return %c0_i32, %c0_i32_0 : i32, i32
  }
  func.func @transform_3(%arg0: i32) -> (i32, i32) {
    %c0_i32 = arith.constant 0 : i32
    %c0_i32_0 = arith.constant 0 : i32
    %c0_i32_1 = arith.constant 0 : i32
    return %c0_i32, %c0_i32_0 : i32, i32
  }
  func.func @transform_4(%arg0: i32) -> i32 {
    %c0_i32 = arith.constant 0 : i32
    %c0_i32_0 = arith.constant 0 : i32
    return %c0_i32 : i32
  }
  func.func @transform_5(%arg0: i32) -> (i32, i32) {
    %c0_i32 = arith.constant 0 : i32
    %c0_i32_0 = arith.constant 0 : i32
    return %c0_i32, %arg0 : i32, i32
  }
}

</mosaic_0001>

<llo_original>
// kernel: _distance_head_mlp_impl.1
$region0: #{_distance_head_mlp_impl.1}
  #allocation0 [shape = 'u32[]', space=smem, size = 0x4, offset = 0x4, fixed_abs, tag = 'smem constant byte address 0x4 - core index']
  #allocation1 [shape = 'u32[144,128]{1,0:T(1,128)}', space=vmem, size = 0x12000, scoped, tag = 'internal scratch']
  #allocation2 [shape = 'f32[1]{0:T(128)S(6)}', space=smem, size = 0x200, scoped, tag = 'scoped memory for _distance_head_mlp_impl.1']
  %s0 = inlined_call_operand.vmem [shape: f32[16,36], index: 0, kind: input, shape index: {}]
  %s1 = inlined_call_operand.vmem [shape: f32[128,16], index: 1, kind: input, shape index: {}]
  %s2 = inlined_call_operand.vmem [shape: f32[128,1], index: 2, kind: input, shape index: {}]
  %s3 = inlined_call_operand.vmem [shape: f32[2,128], index: 3, kind: input, shape index: {}]
  %s4 = inlined_call_operand.<no memory space> [shape: f32[1], index: 4, kind: input, shape index: {}]
  %s5 = inlined_call_operand.vmem [shape: f32[1,128], index: 5, kind: output, shape index: {}]
  %s6 = sld [smem:[#allocation0]]
  $region30: #{_distance_head_mlp_impl.1} parent=0
    _
  %s8 = ssub.s32 1, %s6
  %s9 = scalar_select 0, %s8, %s6
  %10 = sst [smem:[#allocation2]] %s4
  // Predicated region
  $region2: #{_distance_head_mlp_impl.1} parent=0 // pred_check
    _
  $region3: #{_distance_head_mlp_impl.1} parent=0 // pred_check_branch
    %12 = sbr.rel (0) target = $region5
  $region4: #{_distance_head_mlp_impl.1} parent=0 // pred_region
    _
  $region5: #{_distance_head_mlp_impl.1} parent=0 // pred_fallthru
    _
  // Predicated region
  $region6: #{_distance_head_mlp_impl.1} parent=0 // pred_check
    _
  $region7: #{_distance_head_mlp_impl.1} parent=0 // pred_check_branch
    %14 = sbr.rel (0) target = $region9
  $region8: #{_distance_head_mlp_impl.1} parent=0 // pred_region
    _
  $region9: #{_distance_head_mlp_impl.1} parent=0 // pred_fallthru
    _
  // Predicated region
  $region10: #{_distance_head_mlp_impl.1} parent=0 // pred_check
    _
  $region11: #{_distance_head_mlp_impl.1} parent=0 // pred_check_branch
    %16 = sbr.rel (0) target = $region13
  $region12: #{_distance_head_mlp_impl.1} parent=0 // pred_region
    _
  $region13: #{_distance_head_mlp_impl.1} parent=0 // pred_fallthru
    _
  // Predicated region
  $region14: #{_distance_head_mlp_impl.1} parent=0 // pred_check
    _
  $region15: #{_distance_head_mlp_impl.1} parent=0 // pred_check_branch
    %18 = sbr.rel (0) target = $region17
  $region16: #{_distance_head_mlp_impl.1} parent=0 // pred_region
    _
  $region17: #{_distance_head_mlp_impl.1} parent=0 // pred_fallthru
    _
  // Predicated region
  $region18: #{_distance_head_mlp_impl.1} parent=0 // pred_check
    _
  $region19: #{_distance_head_mlp_impl.1} parent=0 // pred_check_branch
    %20 = sbr.rel (0) target = $region21
  $region20: #{_distance_head_mlp_impl.1} parent=0 // pred_region
    _
  $region21: #{_distance_head_mlp_impl.1} parent=0 // pred_fallthru
    _
  %v21 = vld [vmem:[%s0] sm:$0xff]
  %v22 = vld [vmem:[%s0 + $0x8] sm:$0xff]
  %v23 = vld [vmem:[%s1] sm:$0xff]
  %v24 = vld [vmem:[%s1 + $0x8] sm:$0xff]
  %v25 = vld [vmem:[%s1 + $0x10] sm:$0xff]
  %v26 = vld [vmem:[%s1 + $0x18] sm:$0xff]
  %v27 = vld [vmem:[%s1 + $0x20] sm:$0xff]
  %v28 = vld [vmem:[%s1 + $0x28] sm:$0xff]
  %v29 = vld [vmem:[%s1 + $0x30] sm:$0xff]
  %v30 = vld [vmem:[%s1 + $0x38] sm:$0xff]
  %v31 = vld [vmem:[%s1 + $0x40] sm:$0xff]
  %v32 = vld [vmem:[%s1 + $0x48] sm:$0xff]
  %v33 = vld [vmem:[%s1 + $0x50] sm:$0xff]
  %v34 = vld [vmem:[%s1 + $0x58] sm:$0xff]
  %v35 = vld [vmem:[%s1 + $0x60] sm:$0xff]
  %v36 = vld [vmem:[%s1 + $0x68] sm:$0xff]
  %v37 = vld [vmem:[%s1 + $0x70] sm:$0xff]
  %v38 = vld [vmem:[%s1 + $0x78] sm:$0xff]
  %v39 = vld [vmem:[%s2] sm:$0xff]
  %v40 = vld [vmem:[%s2 + $0x8] sm:$0xff]
  %v41 = vld [vmem:[%s2 + $0x10] sm:$0xff]
  %v42 = vld [vmem:[%s2 + $0x18] sm:$0xff]
  %v43 = vld [vmem:[%s2 + $0x20] sm:$0xff]
  %v44 = vld [vmem:[%s2 + $0x28] sm:$0xff]
  %v45 = vld [vmem:[%s2 + $0x30] sm:$0xff]
  %v46 = vld [vmem:[%s2 + $0x38] sm:$0xff]
  %v47 = vld [vmem:[%s2 + $0x40] sm:$0xff]
  %v48 = vld [vmem:[%s2 + $0x48] sm:$0xff]
  %v49 = vld [vmem:[%s2 + $0x50] sm:$0xff]
  %v50 = vld [vmem:[%s2 + $0x58] sm:$0xff]
  %v51 = vld [vmem:[%s2 + $0x60] sm:$0xff]
  %v52 = vld [vmem:[%s2 + $0x68] sm:$0xff]
  %v53 = vld [vmem:[%s2 + $0x70] sm:$0xff]
  %v54 = vld [vmem:[%s2 + $0x78] sm:$0xff]
  %56 = vset.pattern.permute.xlu0 0
  %57 = vperm.xlu0 %56, %v39
  %v58 = vpop.permute.xlu0 %57
  %61 = vset.pattern.permute.xlu0 0
  %62 = vperm.xlu0 %61, %v40
  %v63 = vpop.permute.xlu0 %62
  %66 = vset.pattern.permute.xlu0 0
  %67 = vperm.xlu0 %66, %v41
  %v68 = vpop.permute.xlu0 %67
  %71 = vset.pattern.permute.xlu0 0
  %72 = vperm.xlu0 %71, %v42
  %v73 = vpop.permute.xlu0 %72
  %76 = vset.pattern.permute.xlu0 0
  %77 = vperm.xlu0 %76, %v43
  %v78 = vpop.permute.xlu0 %77
  %81 = vset.pattern.permute.xlu0 0
  %82 = vperm.xlu0 %81, %v44
  %v83 = vpop.permute.xlu0 %82
  %86 = vset.pattern.permute.xlu0 0
  %87 = vperm.xlu0 %86, %v45
  %v88 = vpop.permute.xlu0 %87
  %91 = vset.pattern.permute.xlu0 0
  %92 = vperm.xlu0 %91, %v46
  %v93 = vpop.permute.xlu0 %92
  %96 = vset.pattern.permute.xlu0 0
  %97 = vperm.xlu0 %96, %v47
  %v98 = vpop.permute.xlu0 %97
  %101 = vset.pattern.permute.xlu0 0
  %102 = vperm.xlu0 %101, %v48
  %v103 = vpop.permute.xlu0 %102
  %106 = vset.pattern.permute.xlu0 0
  %107 = vperm.xlu0 %106, %v49
  %v108 = vpop.permute.xlu0 %107
  %111 = vset.pattern.permute.xlu0 0
  %112 = vperm.xlu0 %111, %v50
  %v113 = vpop.permute.xlu0 %112
  %116 = vset.pattern.permute.xlu0 0
  %117 = vperm.xlu0 %116, %v51
  %v118 = vpop.permute.xlu0 %117
  %121 = vset.pattern.permute.xlu0 0
  %122 = vperm.xlu0 %121, %v52
  %v123 = vpop.permute.xlu0 %122
  %126 = vset.pattern.permute.xlu0 0
  %127 = vperm.xlu0 %126, %v53
  %v128 = vpop.permute.xlu0 %127
  %131 = vset.pattern.permute.xlu0 0
  %132 = vperm.xlu0 %131, %v54
  %v133 = vpop.permute.xlu0 %132
  %vm135 = vcmask 130048
  %v137 = vsel %vm135, %v23, 0
  %v140 = vsel %vm135, %v24, 0
  %v143 = vsel %vm135, %v25, 0
  %v146 = vsel %vm135, %v26, 0
  %v149 = vsel %vm135, %v27, 0
  %v152 = vsel %vm135, %v28, 0
  %v155 = vsel %vm135, %v29, 0
  %v158 = vsel %vm135, %v30, 0
  %v161 = vsel %vm135, %v31, 0
  %v164 = vsel %vm135, %v32, 0
  %v167 = vsel %vm135, %v33, 0
  %v170 = vsel %vm135, %v34, 0
  %v173 = vsel %vm135, %v35, 0
  %v176 = vsel %vm135, %v36, 0
  %v179 = vsel %vm135, %v37, 0
  %v182 = vsel %vm135, %v38, 0
  %184 = vmatprep.subr.mxu0 0.0
  %185 = vmatpush1.msra.mxu0 0.0
  %186 = vmatprep.subr.mxu0 0.0
  %187 = vmatpush1.msra.mxu0 0.0
  %188 = vmatprep.subr.mxu0 0.0
  %189 = vmatpush1.msra.mxu0 0.0
  %190 = vmatprep.subr.mxu0 0.0
  %191 = vmatpush1.msra.mxu0 0.0
  %192 = vmatprep.subr.mxu0 0.0
  %193 = vmatpush1.msra.mxu0 0.0
  %194 = vmatprep.subr.mxu0 0.0
  %195 = vmatpush1.msra.mxu0 0.0
  %196 = vmatprep.subr.mxu0 0.0
  %197 = vmatpush1.msra.mxu0 0.0
  %198 = vmatprep.subr.mxu0 0.0
  %199 = vmatpush1.msra.mxu0 0.0
  %200 = vmatprep.subr.mxu0 0.0
  %201 = vmatpush1.msra.mxu0 0.0
  %202 = vmatprep.subr.mxu0 0.0
  %203 = vmatpush1.msra.mxu0 0.0
  %204 = vmatprep.subr.mxu0 0.0
  %205 = vmatpush1.msra.mxu0 0.0
  %206 = vmatprep.subr.mxu0 0.0
  %207 = vmatpush1.msra.mxu0 0.0
  %208 = vmatprep.subr.mxu0 0.0
  %209 = vmatpush1.msra.mxu0 0.0
  %210 = vmatprep.subr.mxu0 0.0
  %211 = vmatpush1.msra.mxu0 0.0
  %212 = vmatprep.subr.mxu0 0.0
  %v213 = vand.u32 %v22, 4294901760
  %214 = vmatpush1.msra.mxu0 %v213
  %215 = vmatprep.subr.mxu0 0.0
  %v216 = vand.u32 %v21, 4294901760
  %217 = vmatpush1.msra.mxu0 %v216
  %218 = vmatprep.subr.mxu0 0.0
  %219 = vmatpush2.msra.mxu0 0.0
  %220 = vmatprep.subr.mxu0 0.0
  %221 = vmatpush2.msra.mxu0 0.0
  %222 = vmatprep.subr.mxu0 0.0
  %223 = vmatpush2.msra.mxu0 0.0
  %224 = vmatprep.subr.mxu0 0.0
  %225 = vmatpush2.msra.mxu0 0.0
  %226 = vmatprep.subr.mxu0 0.0
  %227 = vmatpush2.msra.mxu0 0.0
  %228 = vmatprep.subr.mxu0 0.0
  %229 = vmatpush2.msra.mxu0 0.0
  %230 = vmatprep.subr.mxu0 0.0
  %231 = vmatpush2.msra.mxu0 0.0
  %232 = vmatprep.subr.mxu0 0.0
  %233 = vmatpush2.msra.mxu0 0.0
  %234 = vmatprep.subr.mxu0 0.0
  %235 = vmatpush2.msra.mxu0 0.0
  %236 = vmatprep.subr.mxu0 0.0
  %237 = vmatpush2.msra.mxu0 0.0
  %238 = vmatprep.subr.mxu0 0.0
  %239 = vmatpush2.msra.mxu0 0.0
  %240 = vmatprep.subr.mxu0 0.0
  %241 = vmatpush2.msra.mxu0 0.0
  %242 = vmatprep.subr.mxu0 0.0
  %243 = vmatpush2.msra.mxu0 0.0
  %244 = vmatprep.subr.mxu0 0.0
  %245 = vmatpush2.msra.mxu0 0.0
  %246 = vmatprep.subr.mxu0 0.0
  %247 = vmatpush2.msra.mxu0 0.0
  %248 = vmatprep.subr.mxu0 0.0
  %249 = vmatpush2.msra.mxu0 0.0
  %250 = vmatprep.mubr.f32.mxu0 0.0
  %v251 = vand.u32 %v137, 4294901760
  %v252 = vsub.f32 %v137, %v251
  %v253 = vand.u32 %v252, 4294901760
  %v254 = vsub.f32 %v252, %v253
  %v255 = vand.u32 %v254, 4294901760
  %256 = vmatmul.mubr.f32.gmra.mxu0 %v255
  %v257 = vpop.f32.mrf.mxu0
  %v258 = vadd.f32 %v58, %v257
  %v259 = vpop.f32.mrf.mxu0
  %260 = vmatprep.mubr.f32.mxu0 0.0
  %v261 = vand.u32 %v140, 4294901760
  %v262 = vsub.f32 %v140, %v261
  %v263 = vand.u32 %v262, 4294901760
  %v264 = vsub.f32 %v262, %v263
  %v265 = vand.u32 %v264, 4294901760
  %266 = vmatmul.mubr.f32.gmra.mxu0 %v265
  %v267 = vpop.f32.mrf.mxu0
  %v268 = vadd.f32 %v63, %v267
  %v269 = vpop.f32.mrf.mxu0
  %270 = vmatprep.mubr.f32.mxu0 0.0
  %v271 = vand.u32 %v143, 4294901760
  %v272 = vsub.f32 %v143, %v271
  %v273 = vand.u32 %v272, 4294901760
  %v274 = vsub.f32 %v272, %v273
  %v275 = vand.u32 %v274, 4294901760
  %276 = vmatmul.mubr.f32.gmra.mxu0 %v275
  %v277 = vpop.f32.mrf.mxu0
  %v278 = vadd.f32 %v68, %v277
  %v279 = vpop.f32.mrf.mxu0
  %280 = vmatprep.mubr.f32.mxu0 0.0
  %v281 = vand.u32 %v146, 4294901760
  %v282 = vsub.f32 %v146, %v281
  %v283 = vand.u32 %v282, 4294901760
  %v284 = vsub.f32 %v282, %v283
  %v285 = vand.u32 %v284, 4294901760
  %286 = vmatmul.mubr.f32.gmra.mxu0 %v285
  %v287 = vpop.f32.mrf.mxu0
  %v288 = vadd.f32 %v73, %v287
  %v289 = vpop.f32.mrf.mxu0
  %290 = vmatprep.mubr.f32.mxu0 0.0
  %v291 = vand.u32 %v149, 4294901760
  %v292 = vsub.f32 %v149, %v291
  %v293 = vand.u32 %v292, 4294901760
  %v294 = vsub.f32 %v292, %v293
  %v295 = vand.u32 %v294, 4294901760
  %296 = vmatmul.mubr.f32.gmra.mxu0 %v295
  %v297 = vpop.f32.mrf.mxu0
  %v298 = vadd.f32 %v78, %v297
  %v299 = vpop.f32.mrf.mxu0
  %300 = vmatprep.mubr.f32.mxu0 0.0
  %v301 = vand.u32 %v152, 4294901760
  %v302 = vsub.f32 %v152, %v301
  %v303 = vand.u32 %v302, 4294901760
  %v304 = vsub.f32 %v302, %v303
  %v305 = vand.u32 %v304, 4294901760
  %306 = vmatmul.mubr.f32.gmra.mxu0 %v305
  %v307 = vpop.f32.mrf.mxu0
  %v308 = vadd.f32 %v83, %v307
  %v309 = vpop.f32.mrf.mxu0
  %310 = vmatprep.mubr.f32.mxu0 0.0
  %v311 = vand.u32 %v155, 4294901760
  %v312 = vsub.f32 %v155, %v311
  %v313 = vand.u32 %v312, 4294901760
  %v314 = vsub.f32 %v312, %v313
  %v315 = vand.u32 %v314, 4294901760
  %316 = vmatmul.mubr.f32.gmra.mxu0 %v315
  %v317 = vpop.f32.mrf.mxu0
  %v318 = vadd.f32 %v88, %v317
  %v319 = vpop.f32.mrf.mxu0
  %320 = vmatprep.mubr.f32.mxu0 0.0
  %v321 = vand.u32 %v158, 4294901760
  %v322 = vsub.f32 %v158, %v321
  %v323 = vand.u32 %v322, 4294901760
  %v324 = vsub.f32 %v322, %v323
  %v325 = vand.u32 %v324, 4294901760
  %326 = vmatmul.mubr.f32.gmra.mxu0 %v325
  %v327 = vpop.f32.mrf.mxu0
  %v328 = vadd.f32 %v93, %v327
  %v329 = vpop.f32.mrf.mxu0
  %330 = vmatprep.mubr.f32.mxu0 0.0
  %v331 = vand.u32 %v161, 4294901760
  %v332 = vsub.f32 %v161, %v331
  %v333 = vand.u32 %v332, 4294901760
  %v334 = vsub.f32 %v332, %v333
  %v335 = vand.u32 %v334, 4294901760
  %336 = vmatmul.mubr.f32.gmra.mxu0 %v335
  %v337 = vpop.f32.mrf.mxu0
  %v338 = vadd.f32 %v98, %v337
  %v339 = vpop.f32.mrf.mxu0
  %340 = vmatprep.mubr.f32.mxu0 0.0
  %v341 = vand.u32 %v164, 4294901760
  %v342 = vsub.f32 %v164, %v341
  %v343 = vand.u32 %v342, 4294901760
  %v344 = vsub.f32 %v342, %v343
  %v345 = vand.u32 %v344, 4294901760
  %346 = vmatmul.mubr.f32.gmra.mxu0 %v345
  %v347 = vpop.f32.mrf.mxu0
  %v348 = vadd.f32 %v103, %v347
  %v349 = vpop.f32.mrf.mxu0
  %350 = vmatprep.mubr.f32.mxu0 0.0
  %v351 = vand.u32 %v167, 4294901760
  %v352 = vsub.f32 %v167, %v351
  %v353 = vand.u32 %v352, 4294901760
  %v354 = vsub.f32 %v352, %v353
  %v355 = vand.u32 %v354, 4294901760
  %356 = vmatmul.mubr.f32.gmra.mxu0 %v355
  %v357 = vpop.f32.mrf.mxu0
  %v358 = vadd.f32 %v108, %v357
  %v359 = vpop.f32.mrf.mxu0
  %360 = vmatprep.mubr.f32.mxu0 0.0
  %v361 = vand.u32 %v170, 4294901760
  %v362 = vsub.f32 %v170, %v361
  %v363 = vand.u32 %v362, 4294901760
  %v364 = vsub.f32 %v362, %v363
  %v365 = vand.u32 %v364, 4294901760
  %366 = vmatmul.mubr.f32.gmra.mxu0 %v365
  %v367 = vpop.f32.mrf.mxu0
  %v368 = vadd.f32 %v113, %v367
  %v369 = vpop.f32.mrf.mxu0
  %370 = vmatprep.mubr.f32.mxu0 0.0
  %v371 = vand.u32 %v173, 4294901760
  %v372 = vsub.f32 %v173, %v371
  %v373 = vand.u32 %v372, 4294901760
  %v374 = vsub.f32 %v372, %v373
  %v375 = vand.u32 %v374, 4294901760
  %376 = vmatmul.mubr.f32.gmra.mxu0 %v375
  %v377 = vpop.f32.mrf.mxu0
  %v378 = vadd.f32 %v118, %v377
  %v379 = vpop.f32.mrf.mxu0
  %380 = vmatprep.mubr.f32.mxu0 0.0
  %v381 = vand.u32 %v176, 4294901760
  %v382 = vsub.f32 %v176, %v381
  %v383 = vand.u32 %v382, 4294901760
  %v384 = vsub.f32 %v382, %v383
  %v385 = vand.u32 %v384, 4294901760
  %386 = vmatmul.mubr.f32.gmra.mxu0 %v385
  %v387 = vpop.f32.mrf.mxu0
  %v388 = vadd.f32 %v123, %v387
  %v389 = vpop.f32.mrf.mxu0
  %390 = vmatprep.mubr.f32.mxu0 0.0
  %v391 = vand.u32 %v179, 4294901760
  %v392 = vsub.f32 %v179, %v391
  %v393 = vand.u32 %v392, 4294901760
  %v394 = vsub.f32 %v392, %v393
  %v395 = vand.u32 %v394, 4294901760
  %396 = vmatmul.mubr.f32.gmra.mxu0 %v395
  %v397 = vpop.f32.mrf.mxu0
  %v398 = vadd.f32 %v128, %v397
  %v399 = vpop.f32.mrf.mxu0
  %400 = vmatprep.mubr.f32.mxu0 0.0
  %v401 = vand.u32 %v182, 4294901760
  %v402 = vsub.f32 %v182, %v401
  %v403 = vand.u32 %v402, 4294901760
  %v404 = vsub.f32 %v402, %v403
  %v405 = vand.u32 %v404, 4294901760
  %406 = vmatmul.mubr.f32.gmra.mxu0 %v405
  %v407 = vpop.f32.mrf.mxu0
  %v408 = vadd.f32 %v133, %v407
  %v409 = vpop.f32.mrf.mxu0
  %410 = vdwg.mxu0
  %411 = vmatprep.subr.mxu0 0.0
  %412 = vmatpush1.msra.mxu0 0.0
  %413 = vmatprep.subr.mxu0 0.0
  %414 = vmatpush1.msra.mxu0 0.0
  %415 = vmatprep.subr.mxu0 0.0
  %416 = vmatpush1.msra.mxu0 0.0
  %417 = vmatprep.subr.mxu0 0.0
  %418 = vmatpush1.msra.mxu0 0.0
  %419 = vmatprep.subr.mxu0 0.0
  %420 = vmatpush1.msra.mxu0 0.0
  %421 = vmatprep.subr.mxu0 0.0
  %422 = vmatpush1.msra.mxu0 0.0
  %423 = vmatprep.subr.mxu0 0.0
  %424 = vmatpush1.msra.mxu0 0.0
  %425 = vmatprep.subr.mxu0 0.0
  %426 = vmatpush1.msra.mxu0 0.0
  %427 = vmatprep.subr.mxu0 0.0
  %428 = vmatpush1.msra.mxu0 0.0
  %429 = vmatprep.subr.mxu0 0.0
  %430 = vmatpush1.msra.mxu0 0.0
  %431 = vmatprep.subr.mxu0 0.0
  %432 = vmatpush1.msra.mxu0 0.0
  %433 = vmatprep.subr.mxu0 0.0
  %434 = vmatpush1.msra.mxu0 0.0
  %435 = vmatprep.subr.mxu0 0.0
  %436 = vmatpush1.msra.mxu0 0.0
  %437 = vmatprep.subr.mxu0 0.0
  %438 = vmatpush1.msra.mxu0 0.0
  %439 = vmatprep.subr.mxu0 0.0
  %v440 = vand.u32 %v22, 4294901760
  %v441 = vsub.f32 %v22, %v440
  %v442 = vand.u32 %v441, 4294901760
  %v443 = vsub.f32 %v441, %v442
  %v444 = vand.u32 %v443, 4294901760
  %445 = vmatpush1.msra.mxu0 %v444
  %446 = vmatprep.subr.mxu0 0.0
  %v447 = vand.u32 %v21, 4294901760
  %v448 = vsub.f32 %v21, %v447
  %v449 = vand.u32 %v448, 4294901760
  %v450 = vsub.f32 %v448, %v449
  %v451 = vand.u32 %v450, 4294901760
  %452 = vmatpush1.msra.mxu0 %v451
  %453 = vmatprep.subr.mxu0 0.0
  %454 = vmatpush2.msra.mxu0 0.0
  %455 = vmatprep.subr.mxu0 0.0
  %456 = vmatpush2.msra.mxu0 0.0
  %457 = vmatprep.subr.mxu0 0.0
  %458 = vmatpush2.msra.mxu0 0.0
  %459 = vmatprep.subr.mxu0 0.0
  %460 = vmatpush2.msra.mxu0 0.0
  %461 = vmatprep.subr.mxu0 0.0
  %462 = vmatpush2.msra.mxu0 0.0
  %463 = vmatprep.subr.mxu0 0.0
  %464 = vmatpush2.msra.mxu0 0.0
  %465 = vmatprep.subr.mxu0 0.0
  %466 = vmatpush2.msra.mxu0 0.0
  %467 = vmatprep.subr.mxu0 0.0
  %468 = vmatpush2.msra.mxu0 0.0
  %469 = vmatprep.subr.mxu0 0.0
  %470 = vmatpush2.msra.mxu0 0.0
  %471 = vmatprep.subr.mxu0 0.0
  %472 = vmatpush2.msra.mxu0 0.0
  %473 = vmatprep.subr.mxu0 0.0
  %474 = vmatpush2.msra.mxu0 0.0
  %475 = vmatprep.subr.mxu0 0.0
  %476 = vmatpush2.msra.mxu0 0.0
  %477 = vmatprep.subr.mxu0 0.0
  %478 = vmatpush2.msra.mxu0 0.0
  %479 = vmatprep.subr.mxu0 0.0
  %480 = vmatpush2.msra.mxu0 0.0
  %481 = vmatprep.subr.mxu0 0.0
  %482 = vmatpush2.msra.mxu0 0.0
  %483 = vmatprep.subr.mxu0 0.0
  %484 = vmatpush2.msra.mxu0 0.0
  %485 = vmatprep.mubr.f32.mxu0 0.0
  %v486 = vand.u32 %v137, 4294901760
  %487 = vmatmul.mubr.f32.gmra.mxu0 %v486
  %v488 = vpop.f32.mrf.mxu0
  %v489 = vadd.f32 %v258, %v488
  %v490 = vpop.f32.mrf.mxu0
  %491 = vmatprep.mubr.f32.mxu0 0.0
  %v492 = vand.u32 %v140, 4294901760
  %493 = vmatmul.mubr.f32.gmra.mxu0 %v492
  %v494 = vpop.f32.mrf.mxu0
  %v495 = vadd.f32 %v268, %v494
  %v496 = vpop.f32.mrf.mxu0
  %497 = vmatprep.mubr.f32.mxu0 0.0
  %v498 = vand.u32 %v143, 4294901760
  %499 = vmatmul.mubr.f32.gmra.mxu0 %v498
  %v500 = vpop.f32.mrf.mxu0
  %v501 = vadd.f32 %v278, %v500
  %v502 = vpop.f32.mrf.mxu0
  %503 = vmatprep.mubr.f32.mxu0 0.0
  %v504 = vand.u32 %v146, 4294901760
  %505 = vmatmul.mubr.f32.gmra.mxu0 %v504
  %v506 = vpop.f32.mrf.mxu0
  %v507 = vadd.f32 %v288, %v506
  %v508 = vpop.f32.mrf.mxu0
  %509 = vmatprep.mubr.f32.mxu0 0.0
  %v510 = vand.u32 %v149, 4294901760
  %511 = vmatmul.mubr.f32.gmra.mxu0 %v510
  %v512 = vpop.f32.mrf.mxu0
  %v513 = vadd.f32 %v298, %v512
  %v514 = vpop.f32.mrf.mxu0
  %515 = vmatprep.mubr.f32.mxu0 0.0
  %v516 = vand.u32 %v152, 4294901760
  %517 = vmatmul.mubr.f32.gmra.mxu0 %v516
  %v518 = vpop.f32.mrf.mxu0
  %v519 = vadd.f32 %v308, %v518
  %v520 = vpop.f32.mrf.mxu0
  %521 = vmatprep.mubr.f32.mxu0 0.0
  %v522 = vand.u32 %v155, 4294901760
  %523 = vmatmul.mubr.f32.gmra.mxu0 %v522
  %v524 = vpop.f32.mrf.mxu0
  %v525 = vadd.f32 %v318, %v524
  %v526 = vpop.f32.mrf.mxu0
  %527 = vmatprep.mubr.f32.mxu0 0.0
  %v528 = vand.u32 %v158, 4294901760
  %529 = vmatmul.mubr.f32.gmra.mxu0 %v528
  %v530 = vpop.f32.mrf.mxu0
  %v531 = vadd.f32 %v328, %v530
  %v532 = vpop.f32.mrf.mxu0
  %533 = vmatprep.mubr.f32.mxu0 0.0
  %v534 = vand.u32 %v161, 4294901760
  %535 = vmatmul.mubr.f32.gmra.mxu0 %v534
  %v536 = vpop.f32.mrf.mxu0
  %v537 = vadd.f32 %v338, %v536
  %v538 = vpop.f32.mrf.mxu0
  %539 = vmatprep.mubr.f32.mxu0 0.0
  %v540 = vand.u32 %v164, 4294901760
  %541 = vmatmul.mubr.f32.gmra.mxu0 %v540
  %v542 = vpop.f32.mrf.mxu0
  %v543 = vadd.f32 %v348, %v542
  %v544 = vpop.f32.mrf.mxu0
  %545 = vmatprep.mubr.f32.mxu0 0.0
  %v546 = vand.u32 %v167, 4294901760
  %547 = vmatmul.mubr.f32.gmra.mxu0 %v546
  %v548 = vpop.f32.mrf.mxu0
  %v549 = vadd.f32 %v358, %v548
  %v550 = vpop.f32.mrf.mxu0
  %551 = vmatprep.mubr.f32.mxu0 0.0
  %v552 = vand.u32 %v170, 4294901760
  %553 = vmatmul.mubr.f32.gmra.mxu0 %v552
  %v554 = vpop.f32.mrf.mxu0
  %v555 = vadd.f32 %v368, %v554
  %v556 = vpop.f32.mrf.mxu0
  %557 = vmatprep.mubr.f32.mxu0 0.0
  %v558 = vand.u32 %v173, 4294901760
  %559 = vmatmul.mubr.f32.gmra.mxu0 %v558
  %v560 = vpop.f32.mrf.mxu0
  %v561 = vadd.f32 %v378, %v560
  %v562 = vpop.f32.mrf.mxu0
  %563 = vmatprep.mubr.f32.mxu0 0.0
  %v564 = vand.u32 %v176, 4294901760
  %565 = vmatmul.mubr.f32.gmra.mxu0 %v564
  %v566 = vpop.f32.mrf.mxu0
  %v567 = vadd.f32 %v388, %v566
  %v568 = vpop.f32.mrf.mxu0
  %569 = vmatprep.mubr.f32.mxu0 0.0
  %v570 = vand.u32 %v179, 4294901760
  %571 = vmatmul.mubr.f32.gmra.mxu0 %v570
  %v572 = vpop.f32.mrf.mxu0
  %v573 = vadd.f32 %v398, %v572
  %v574 = vpop.f32.mrf.mxu0
  %575 = vmatprep.mubr.f32.mxu0 0.0
  %v576 = vand.u32 %v182, 4294901760
  %577 = vmatmul.mubr.f32.gmra.mxu0 %v576
  %v578 = vpop.f32.mrf.mxu0
  %v579 = vadd.f32 %v408, %v578
  %v580 = vpop.f32.mrf.mxu0
  %581 = vdwg.mxu0
  %582 = vmatprep.subr.mxu0 0.0
  %583 = vmatpush1.msra.mxu0 0.0
  %584 = vmatprep.subr.mxu0 0.0
  %585 = vmatpush1.msra.mxu0 0.0
  %586 = vmatprep.subr.mxu0 0.0
  %587 = vmatpush1.msra.mxu0 0.0
  %588 = vmatprep.subr.mxu0 0.0
  %589 = vmatpush1.msra.mxu0 0.0
  %590 = vmatprep.subr.mxu0 0.0
  %591 = vmatpush1.msra.mxu0 0.0
  %592 = vmatprep.subr.mxu0 0.0
  %593 = vmatpush1.msra.mxu0 0.0
  %594 = vmatprep.subr.mxu0 0.0
  %595 = vmatpush1.msra.mxu0 0.0
  %596 = vmatprep.subr.mxu0 0.0
  %597 = vmatpush1.msra.mxu0 0.0
  %598 = vmatprep.subr.mxu0 0.0
  %599 = vmatpush1.msra.mxu0 0.0
  %600 = vmatprep.subr.mxu0 0.0
  %601 = vmatpush1.msra.mxu0 0.0
  %602 = vmatprep.subr.mxu0 0.0
  %603 = vmatpush1.msra.mxu0 0.0
  %604 = vmatprep.subr.mxu0 0.0
  %605 = vmatpush1.msra.mxu0 0.0
  %606 = vmatprep.subr.mxu0 0.0
  %607 = vmatpush1.msra.mxu0 0.0
  %608 = vmatprep.subr.mxu0 0.0
  %609 = vmatpush1.msra.mxu0 0.0
  %610 = vmatprep.subr.mxu0 0.0
  %v611 = vand.u32 %v22, 4294901760
  %v612 = vsub.f32 %v22, %v611
  %613 = vmatpush1.msra.mxu0 %v612
  %614 = vmatprep.subr.mxu0 0.0
  %v615 = vand.u32 %v21, 4294901760
  %v616 = vsub.f32 %v21, %v615
  %617 = vmatpush1.msra.mxu0 %v616
  %618 = vmatprep.subr.mxu0 0.0
  %619 = vmatpush2.msra.mxu0 0.0
  %620 = vmatprep.subr.mxu0 0.0
  %621 = vmatpush2.msra.mxu0 0.0
  %622 = vmatprep.subr.mxu0 0.0
  %623 = vmatpush2.msra.mxu0 0.0
  %624 = vmatprep.subr.mxu0 0.0
  %625 = vmatpush2.msra.mxu0 0.0
  %626 = vmatprep.subr.mxu0 0.0
  %627 = vmatpush2.msra.mxu0 0.0
  %628 = vmatprep.subr.mxu0 0.0
  %629 = vmatpush2.msra.mxu0 0.0
  %630 = vmatprep.subr.mxu0 0.0
  %631 = vmatpush2.msra.mxu0 0.0
  %632 = vmatprep.subr.mxu0 0.0
  %633 = vmatpush2.msra.mxu0 0.0
  %634 = vmatprep.subr.mxu0 0.0
  %635 = vmatpush2.msra.mxu0 0.0
  %636 = vmatprep.subr.mxu0 0.0
  %637 = vmatpush2.msra.mxu0 0.0
  %638 = vmatprep.subr.mxu0 0.0
  %639 = vmatpush2.msra.mxu0 0.0
  %640 = vmatprep.subr.mxu0 0.0
  %641 = vmatpush2.msra.mxu0 0.0
  %642 = vmatprep.subr.mxu0 0.0
  %643 = vmatpush2.msra.mxu0 0.0
  %644 = vmatprep.subr.mxu0 0.0
  %645 = vmatpush2.msra.mxu0 0.0
  %646 = vmatprep.subr.mxu0 0.0
  %647 = vmatpush2.msra.mxu0 0.0
  %648 = vmatprep.subr.mxu0 0.0
  %649 = vmatpush2.msra.mxu0 0.0
  %650 = vmatprep.mubr.f32.mxu0 0.0
  %v651 = vand.u32 %v137, 4294901760
  %v652 = vsub.f32 %v137, %v651
  %653 = vmatmul.mubr.f32.gmra.mxu0 %v652
  %v654 = vpop.f32.mrf.mxu0
  %v655 = vadd.f32 %v489, %v654
  %v656 = vpop.f32.mrf.mxu0
  %657 = vmatprep.mubr.f32.mxu0 0.0
  %v658 = vand.u32 %v140, 4294901760
  %v659 = vsub.f32 %v140, %v658
  %660 = vmatmul.mubr.f32.gmra.mxu0 %v659
  %v661 = vpop.f32.mrf.mxu0
  %v662 = vadd.f32 %v495, %v661
  %v663 = vpop.f32.mrf.mxu0
  %664 = vmatprep.mubr.f32.mxu0 0.0
  %v665 = vand.u32 %v143, 4294901760
  %v666 = vsub.f32 %v143, %v665
  %667 = vmatmul.mubr.f32.gmra.mxu0 %v666
  %v668 = vpop.f32.mrf.mxu0
  %v669 = vadd.f32 %v501, %v668
  %v670 = vpop.f32.mrf.mxu0
  %671 = vmatprep.mubr.f32.mxu0 0.0
  %v672 = vand.u32 %v146, 4294901760
  %v673 = vsub.f32 %v146, %v672
  %674 = vmatmul.mubr.f32.gmra.mxu0 %v673
  %v675 = vpop.f32.mrf.mxu0
  %v676 = vadd.f32 %v507, %v675
  %v677 = vpop.f32.mrf.mxu0
  %678 = vmatprep.mubr.f32.mxu0 0.0
  %v679 = vand.u32 %v149, 4294901760
  %v680 = vsub.f32 %v149, %v679
  %681 = vmatmul.mubr.f32.gmra.mxu0 %v680
  %v682 = vpop.f32.mrf.mxu0
  %v683 = vadd.f32 %v513, %v682
  %v684 = vpop.f32.mrf.mxu0
  %685 = vmatprep.mubr.f32.mxu0 0.0
  %v686 = vand.u32 %v152, 4294901760
  %v687 = vsub.f32 %v152, %v686
  %688 = vmatmul.mubr.f32.gmra.mxu0 %v687
  %v689 = vpop.f32.mrf.mxu0
  %v690 = vadd.f32 %v519, %v689
  %v691 = vpop.f32.mrf.mxu0
  %692 = vmatprep.mubr.f32.mxu0 0.0
  %v693 = vand.u32 %v155, 4294901760
  %v694 = vsub.f32 %v155, %v693
  %695 = vmatmul.mubr.f32.gmra.mxu0 %v694
  %v696 = vpop.f32.mrf.mxu0
  %v697 = vadd.f32 %v525, %v696
  %v698 = vpop.f32.mrf.mxu0
  %699 = vmatprep.mubr.f32.mxu0 0.0
  %v700 = vand.u32 %v158, 4294901760
  %v701 = vsub.f32 %v158, %v700
  %702 = vmatmul.mubr.f32.gmra.mxu0 %v701
  %v703 = vpop.f32.mrf.mxu0
  %v704 = vadd.f32 %v531, %v703
  %v705 = vpop.f32.mrf.mxu0
  %706 = vmatprep.mubr.f32.mxu0 0.0
  %v707 = vand.u32 %v161, 4294901760
  %v708 = vsub.f32 %v161, %v707
  %709 = vmatmul.mubr.f32.gmra.mxu0 %v708
  %v710 = vpop.f32.mrf.mxu0
  %v711 = vadd.f32 %v537, %v710
  %v712 = vpop.f32.mrf.mxu0
  %713 = vmatprep.mubr.f32.mxu0 0.0
  %v714 = vand.u32 %v164, 4294901760
  %v715 = vsub.f32 %v164, %v714
  %716 = vmatmul.mubr.f32.gmra.mxu0 %v715
  %v717 = vpop.f32.mrf.mxu0
  %v718 = vadd.f32 %v543, %v717
  %v719 = vpop.f32.mrf.mxu0
  %720 = vmatprep.mubr.f32.mxu0 0.0
  %v721 = vand.u32 %v167, 4294901760
  %v722 = vsub.f32 %v167, %v721
  %723 = vmatmul.mubr.f32.gmra.mxu0 %v722
  %v724 = vpop.f32.mrf.mxu0
  %v725 = vadd.f32 %v549, %v724
  %v726 = vpop.f32.mrf.mxu0
  %727 = vmatprep.mubr.f32.mxu0 0.0
  %v728 = vand.u32 %v170, 4294901760
  %v729 = vsub.f32 %v170, %v728
  %730 = vmatmul.mubr.f32.gmra.mxu0 %v729
  %v731 = vpop.f32.mrf.mxu0
  %v732 = vadd.f32 %v555, %v731
  %v733 = vpop.f32.mrf.mxu0
  %734 = vmatprep.mubr.f32.mxu0 0.0
  %v735 = vand.u32 %v173, 4294901760
  %v736 = vsub.f32 %v173, %v735
  %737 = vmatmul.mubr.f32.gmra.mxu0 %v736
  %v738 = vpop.f32.mrf.mxu0
  %v739 = vadd.f32 %v561, %v738
  %v740 = vpop.f32.mrf.mxu0
  %741 = vmatprep.mubr.f32.mxu0 0.0
  %v742 = vand.u32 %v176, 4294901760
  %v743 = vsub.f32 %v176, %v742
  %744 = vmatmul.mubr.f32.gmra.mxu0 %v743
  %v745 = vpop.f32.mrf.mxu0
  %v746 = vadd.f32 %v567, %v745
  %v747 = vpop.f32.mrf.mxu0
  %748 = vmatprep.mubr.f32.mxu0 0.0
  %v749 = vand.u32 %v179, 4294901760
  %v750 = vsub.f32 %v179, %v749
  %751 = vmatmul.mubr.f32.gmra.mxu0 %v750
  %v752 = vpop.f32.mrf.mxu0
  %v753 = vadd.f32 %v573, %v752
  %v754 = vpop.f32.mrf.mxu0
  %755 = vmatprep.mubr.f32.mxu0 0.0
  %v756 = vand.u32 %v182, 4294901760
  %v757 = vsub.f32 %v182, %v756
  %758 = vmatmul.mubr.f32.gmra.mxu0 %v757
  %v759 = vpop.f32.mrf.mxu0
  %v760 = vadd.f32 %v579, %v759
  %v761 = vpop.f32.mrf.mxu0
  %762 = vdwg.mxu0
  %763 = vmatprep.subr.mxu0 0.0
  %764 = vmatpush1.msra.mxu0 0.0
  %765 = vmatprep.subr.mxu0 0.0
  %766 = vmatpush1.msra.mxu0 0.0
  %767 = vmatprep.subr.mxu0 0.0
  %768 = vmatpush1.msra.mxu0 0.0
  %769 = vmatprep.subr.mxu0 0.0
  %770 = vmatpush1.msra.mxu0 0.0
  %771 = vmatprep.subr.mxu0 0.0
  %772 = vmatpush1.msra.mxu0 0.0
  %773 = vmatprep.subr.mxu0 0.0
  %774 = vmatpush1.msra.mxu0 0.0
  %775 = vmatprep.subr.mxu0 0.0
  %776 = vmatpush1.msra.mxu0 0.0
  %777 = vmatprep.subr.mxu0 0.0
  %778 = vmatpush1.msra.mxu0 0.0
  %779 = vmatprep.subr.mxu0 0.0
  %780 = vmatpush1.msra.mxu0 0.0
  %781 = vmatprep.subr.mxu0 0.0
  %782 = vmatpush1.msra.mxu0 0.0
  %783 = vmatprep.subr.mxu0 0.0
  %784 = vmatpush1.msra.mxu0 0.0
  %785 = vmatprep.subr.mxu0 0.0
  %786 = vmatpush1.msra.mxu0 0.0
  %787 = vmatprep.subr.mxu0 0.0
  %788 = vmatpush1.msra.mxu0 0.0
  %789 = vmatprep.subr.mxu0 0.0
  %790 = vmatpush1.msra.mxu0 0.0
  %791 = vmatprep.subr.mxu0 0.0
  %v792 = vand.u32 %v22, 4294901760
  %793 = vmatpush1.msra.mxu0 %v792
  %794 = vmatprep.subr.mxu0 0.0
  %v795 = vand.u32 %v21, 4294901760
  %796 = vmatpush1.msra.mxu0 %v795
  %797 = vmatprep.subr.mxu0 0.0
  %798 = vmatpush2.msra.mxu0 0.0
  %799 = vmatprep.subr.mxu0 0.0
  %800 = vmatpush2.msra.mxu0 0.0
  %801 = vmatprep.subr.mxu0 0.0
  %802 = vmatpush2.msra.mxu0 0.0
  %803 = vmatprep.subr.mxu0 0.0
  %804 = vmatpush2.msra.mxu0 0.0
  %805 = vmatprep.subr.mxu0 0.0
  %806 = vmatpush2.msra.mxu0 0.0
  %807 = vmatprep.subr.mxu0 0.0
  %808 = vmatpush2.msra.mxu0 0.0
  %809 = vmatprep.subr.mxu0 0.0
  %810 = vmatpush2.msra.mxu0 0.0
  %811 = vmatprep.subr.mxu0 0.0
  %812 = vmatpush2.msra.mxu0 0.0
  %813 = vmatprep.subr.mxu0 0.0
  %814 = vmatpush2.msra.mxu0 0.0
  %815 = vmatprep.subr.mxu0 0.0
  %816 = vmatpush2.msra.mxu0 0.0
  %817 = vmatprep.subr.mxu0 0.0
  %818 = vmatpush2.msra.mxu0 0.0
  %819 = vmatprep.subr.mxu0 0.0
  %820 = vmatpush2.msra.mxu0 0.0
  %821 = vmatprep.subr.mxu0 0.0
  %822 = vmatpush2.msra.mxu0 0.0
  %823 = vmatprep.subr.mxu0 0.0
  %824 = vmatpush2.msra.mxu0 0.0
  %825 = vmatprep.subr.mxu0 0.0
  %826 = vmatpush2.msra.mxu0 0.0
  %827 = vmatprep.subr.mxu0 0.0
  %828 = vmatpush2.msra.mxu0 0.0
  %829 = vmatprep.mubr.f32.mxu0 0.0
  %v830 = vand.u32 %v137, 4294901760
  %v831 = vsub.f32 %v137, %v830
  %v832 = vand.u32 %v831, 4294901760
  %833 = vmatmul.mubr.f32.gmra.mxu0 %v832
  %v834 = vpop.f32.mrf.mxu0
  %v835 = vadd.f32 %v655, %v834
  %v836 = vpop.f32.mrf.mxu0
  %837 = vmatprep.mubr.f32.mxu0 0.0
  %v838 = vand.u32 %v140, 4294901760
  %v839 = vsub.f32 %v140, %v838
  %v840 = vand.u32 %v839, 4294901760
  %841 = vmatmul.mubr.f32.gmra.mxu0 %v840
  %v842 = vpop.f32.mrf.mxu0
  %v843 = vadd.f32 %v662, %v842
  %v844 = vpop.f32.mrf.mxu0
  %845 = vmatprep.mubr.f32.mxu0 0.0
  %v846 = vand.u32 %v143, 4294901760
  %v847 = vsub.f32 %v143, %v846
  %v848 = vand.u32 %v847, 4294901760
  %849 = vmatmul.mubr.f32.gmra.mxu0 %v848
  %v850 = vpop.f32.mrf.mxu0
  %v851 = vadd.f32 %v669, %v850
  %v852 = vpop.f32.mrf.mxu0
  %853 = vmatprep.mubr.f32.mxu0 0.0
  %v854 = vand.u32 %v146, 4294901760
  %v855 = vsub.f32 %v146, %v854
  %v856 = vand.u32 %v855, 4294901760
  %857 = vmatmul.mubr.f32.gmra.mxu0 %v856
  %v858 = vpop.f32.mrf.mxu0
  %v859 = vadd.f32 %v676, %v858
  %v860 = vpop.f32.mrf.mxu0
  %861 = vmatprep.mubr.f32.mxu0 0.0
  %v862 = vand.u32 %v149, 4294901760
  %v863 = vsub.f32 %v149, %v862
  %v864 = vand.u32 %v863, 4294901760
  %865 = vmatmul.mubr.f32.gmra.mxu0 %v864
  %v866 = vpop.f32.mrf.mxu0
  %v867 = vadd.f32 %v683, %v866
  %v868 = vpop.f32.mrf.mxu0
  %869 = vmatprep.mubr.f32.mxu0 0.0
  %v870 = vand.u32 %v152, 4294901760
  %v871 = vsub.f32 %v152, %v870
  %v872 = vand.u32 %v871, 4294901760
  %873 = vmatmul.mubr.f32.gmra.mxu0 %v872
  %v874 = vpop.f32.mrf.mxu0
  %v875 = vadd.f32 %v690, %v874
  %v876 = vpop.f32.mrf.mxu0
  %877 = vmatprep.mubr.f32.mxu0 0.0
  %v878 = vand.u32 %v155, 4294901760
  %v879 = vsub.f32 %v155, %v878
  %v880 = vand.u32 %v879, 4294901760
  %881 = vmatmul.mubr.f32.gmra.mxu0 %v880
  %v882 = vpop.f32.mrf.mxu0
  %v883 = vadd.f32 %v697, %v882
  %v884 = vpop.f32.mrf.mxu0
  %885 = vmatprep.mubr.f32.mxu0 0.0
  %v886 = vand.u32 %v158, 4294901760
  %v887 = vsub.f32 %v158, %v886
  %v888 = vand.u32 %v887, 4294901760
  %889 = vmatmul.mubr.f32.gmra.mxu0 %v888
  %v890 = vpop.f32.mrf.mxu0
  %v891 = vadd.f32 %v704, %v890
  %v892 = vpop.f32.mrf.mxu0
  %893 = vmatprep.mubr.f32.mxu0 0.0
  %v894 = vand.u32 %v161, 4294901760
  %v895 = vsub.f32 %v161, %v894
  %v896 = vand.u32 %v895, 4294901760
  %897 = vmatmul.mubr.f32.gmra.mxu0 %v896
  %v898 = vpop.f32.mrf.mxu0
  %v899 = vadd.f32 %v711, %v898
  %v900 = vpop.f32.mrf.mxu0
  %901 = vmatprep.mubr.f32.mxu0 0.0
  %v902 = vand.u32 %v164, 4294901760
  %v903 = vsub.f32 %v164, %v902
  %v904 = vand.u32 %v903, 4294901760
  %905 = vmatmul.mubr.f32.gmra.mxu0 %v904
  %v906 = vpop.f32.mrf.mxu0
  %v907 = vadd.f32 %v718, %v906
  %v908 = vpop.f32.mrf.mxu0
  %909 = vmatprep.mubr.f32.mxu0 0.0
  %v910 = vand.u32 %v167, 4294901760
  %v911 = vsub.f32 %v167, %v910
  %v912 = vand.u32 %v911, 4294901760
  %913 = vmatmul.mubr.f32.gmra.mxu0 %v912
  %v914 = vpop.f32.mrf.mxu0
  %v915 = vadd.f32 %v725, %v914
  %v916 = vpop.f32.mrf.mxu0
  %917 = vmatprep.mubr.f32.mxu0 0.0
  %v918 = vand.u32 %v170, 4294901760
  %v919 = vsub.f32 %v170, %v918
  %v920 = vand.u32 %v919, 4294901760
  %921 = vmatmul.mubr.f32.gmra.mxu0 %v920
  %v922 = vpop.f32.mrf.mxu0
  %v923 = vadd.f32 %v732, %v922
  %v924 = vpop.f32.mrf.mxu0
  %925 = vmatprep.mubr.f32.mxu0 0.0
  %v926 = vand.u32 %v173, 4294901760
  %v927 = vsub.f32 %v173, %v926
  %v928 = vand.u32 %v927, 4294901760
  %929 = vmatmul.mubr.f32.gmra.mxu0 %v928
  %v930 = vpop.f32.mrf.mxu0
  %v931 = vadd.f32 %v739, %v930
  %v932 = vpop.f32.mrf.mxu0
  %933 = vmatprep.mubr.f32.mxu0 0.0
  %v934 = vand.u32 %v176, 4294901760
  %v935 = vsub.f32 %v176, %v934
  %v936 = vand.u32 %v935, 4294901760
  %937 = vmatmul.mubr.f32.gmra.mxu0 %v936
  %v938 = vpop.f32.mrf.mxu0
  %v939 = vadd.f32 %v746, %v938
  %v940 = vpop.f32.mrf.mxu0
  %941 = vmatprep.mubr.f32.mxu0 0.0
  %v942 = vand.u32 %v179, 4294901760
  %v943 = vsub.f32 %v179, %v942
  %v944 = vand.u32 %v943, 4294901760
  %945 = vmatmul.mubr.f32.gmra.mxu0 %v944
  %v946 = vpop.f32.mrf.mxu0
  %v947 = vadd.f32 %v753, %v946
  %v948 = vpop.f32.mrf.mxu0
  %949 = vmatprep.mubr.f32.mxu0 0.0
  %v950 = vand.u32 %v182, 4294901760
  %v951 = vsub.f32 %v182, %v950
  %v952 = vand.u32 %v951, 4294901760
  %953 = vmatmul.mubr.f32.gmra.mxu0 %v952
  %v954 = vpop.f32.mrf.mxu0
  %v955 = vadd.f32 %v760, %v954
  %v956 = vpop.f32.mrf.mxu0
  %957 = vdwg.mxu0
  %958 = vmatprep.subr.mxu0 0.0
  %959 = vmatpush1.msra.mxu0 0.0
  %960 = vmatprep.subr.mxu0 0.0
  %961 = vmatpush1.msra.mxu0 0.0
  %962 = vmatprep.subr.mxu0 0.0
  %963 = vmatpush1.msra.mxu0 0.0
  %964 = vmatprep.subr.mxu0 0.0
  %965 = vmatpush1.msra.mxu0 0.0
  %966 = vmatprep.subr.mxu0 0.0
  %967 = vmatpush1.msra.mxu0 0.0
  %968 = vmatprep.subr.mxu0 0.0
  %969 = vmatpush1.msra.mxu0 0.0
  %970 = vmatprep.subr.mxu0 0.0
  %971 = vmatpush1.msra.mxu0 0.0
  %972 = vmatprep.subr.mxu0 0.0
  %973 = vmatpush1.msra.mxu0 0.0
  %974 = vmatprep.subr.mxu0 0.0
  %975 = vmatpush1.msra.mxu0 0.0
  %976 = vmatprep.subr.mxu0 0.0
  %977 = vmatpush1.msra.mxu0 0.0
  %978 = vmatprep.subr.mxu0 0.0
  %979 = vmatpush1.msra.mxu0 0.0
  %980 = vmatprep.subr.mxu0 0.0
  %981 = vmatpush1.msra.mxu0 0.0
  %982 = vmatprep.subr.mxu0 0.0
  %983 = vmatpush1.msra.mxu0 0.0
  %984 = vmatprep.subr.mxu0 0.0
  %985 = vmatpush1.msra.mxu0 0.0
  %986 = vmatprep.subr.mxu0 0.0
  %v987 = vand.u32 %v22, 4294901760
  %v988 = vsub.f32 %v22, %v987
  %v989 = vand.u32 %v988, 4294901760
  %990 = vmatpush1.msra.mxu0 %v989
  %991 = vmatprep.subr.mxu0 0.0
  %v992 = vand.u32 %v21, 4294901760
  %v993 = vsub.f32 %v21, %v992
  %v994 = vand.u32 %v993, 4294901760
  %995 = vmatpush1.msra.mxu0 %v994
  %996 = vmatprep.subr.mxu0 0.0
  %997 = vmatpush2.msra.mxu0 0.0
  %998 = vmatprep.subr.mxu0 0.0
  %999 = vmatpush2.msra.mxu0 0.0
  %1000 = vmatprep.subr.mxu0 0.0
  %1001 = vmatpush2.msra.mxu0 0.0
  %1002 = vmatprep.subr.mxu0 0.0
  %1003 = vmatpush2.msra.mxu0 0.0
  %1004 = vmatprep.subr.mxu0 0.0
  %1005 = vmatpush2.msra.mxu0 0.0
  %1006 = vmatprep.subr.mxu0 0.0
  %1007 = vmatpush2.msra.mxu0 0.0
  %1008 = vmatprep.subr.mxu0 0.0
  %1009 = vmatpush2.msra.mxu0 0.0
  %1010 = vmatprep.subr.mxu0 0.0
  %1011 = vmatpush2.msra.mxu0 0.0
  %1012 = vmatprep.subr.mxu0 0.0
  %1013 = vmatpush2.msra.mxu0 0.0
  %1014 = vmatprep.subr.mxu0 0.0
  %1015 = vmatpush2.msra.mxu0 0.0
  %1016 = vmatprep.subr.mxu0 0.0
  %1017 = vmatpush2.msra.mxu0 0.0
  %1018 = vmatprep.subr.mxu0 0.0
  %1019 = vmatpush2.msra.mxu0 0.0
  %1020 = vmatprep.subr.mxu0 0.0
  %1021 = vmatpush2.msra.mxu0 0.0
  %1022 = vmatprep.subr.mxu0 0.0
  %1023 = vmatpush2.msra.mxu0 0.0
  %1024 = vmatprep.subr.mxu0 0.0
  %1025 = vmatpush2.msra.mxu0 0.0
  %1026 = vmatprep.subr.mxu0 0.0
  %1027 = vmatpush2.msra.mxu0 0.0
  %1028 = vmatprep.mubr.f32.mxu0 0.0
  %v1029 = vand.u32 %v137, 4294901760
  %1030 = vmatmul.mubr.f32.gmra.mxu0 %v1029
  %v1031 = vpop.f32.mrf.mxu0
  %v1032 = vadd.f32 %v835, %v1031
  %v1033 = vpop.f32.mrf.mxu0
  %1034 = vmatprep.mubr.f32.mxu0 0.0
  %v1035 = vand.u32 %v140, 4294901760
  %1036 = vmatmul.mubr.f32.gmra.mxu0 %v1035
  %v1037 = vpop.f32.mrf.mxu0
  %v1038 = vadd.f32 %v843, %v1037
  %v1039 = vpop.f32.mrf.mxu0
  %1040 = vmatprep.mubr.f32.mxu0 0.0
  %v1041 = vand.u32 %v143, 4294901760
  %1042 = vmatmul.mubr.f32.gmra.mxu0 %v1041
  %v1043 = vpop.f32.mrf.mxu0
  %v1044 = vadd.f32 %v851, %v1043
  %v1045 = vpop.f32.mrf.mxu0
  %1046 = vmatprep.mubr.f32.mxu0 0.0
  %v1047 = vand.u32 %v146, 4294901760
  %1048 = vmatmul.mubr.f32.gmra.mxu0 %v1047
  %v1049 = vpop.f32.mrf.mxu0
  %v1050 = vadd.f32 %v859, %v1049
  %v1051 = vpop.f32.mrf.mxu0
  %1052 = vmatprep.mubr.f32.mxu0 0.0
  %v1053 = vand.u32 %v149, 4294901760
  %1054 = vmatmul.mubr.f32.gmra.mxu0 %v1053
  %v1055 = vpop.f32.mrf.mxu0
  %v1056 = vadd.f32 %v867, %v1055
  %v1057 = vpop.f32.mrf.mxu0
  %1058 = vmatprep.mubr.f32.mxu0 0.0
  %v1059 = vand.u32 %v152, 4294901760
  %1060 = vmatmul.mubr.f32.gmra.mxu0 %v1059
  %v1061 = vpop.f32.mrf.mxu0
  %v1062 = vadd.f32 %v875, %v1061
  %v1063 = vpop.f32.mrf.mxu0
  %1064 = vmatprep.mubr.f32.mxu0 0.0
  %v1065 = vand.u32 %v155, 4294901760
  %1066 = vmatmul.mubr.f32.gmra.mxu0 %v1065
  %v1067 = vpop.f32.mrf.mxu0
  %v1068 = vadd.f32 %v883, %v1067
  %v1069 = vpop.f32.mrf.mxu0
  %1070 = vmatprep.mubr.f32.mxu0 0.0
  %v1071 = vand.u32 %v158, 4294901760
  %1072 = vmatmul.mubr.f32.gmra.mxu0 %v1071
  %v1073 = vpop.f32.mrf.mxu0
  %v1074 = vadd.f32 %v891, %v1073
  %v1075 = vpop.f32.mrf.mxu0
  %1076 = vmatprep.mubr.f32.mxu0 0.0
  %v1077 = vand.u32 %v161, 4294901760
  %1078 = vmatmul.mubr.f32.gmra.mxu0 %v1077
  %v1079 = vpop.f32.mrf.mxu0
  %v1080 = vadd.f32 %v899, %v1079
  %v1081 = vpop.f32.mrf.mxu0
  %1082 = vmatprep.mubr.f32.mxu0 0.0
  %v1083 = vand.u32 %v164, 4294901760
  %1084 = vmatmul.mubr.f32.gmra.mxu0 %v1083
  %v1085 = vpop.f32.mrf.mxu0
  %v1086 = vadd.f32 %v907, %v1085
  %v1087 = vpop.f32.mrf.mxu0
  %1088 = vmatprep.mubr.f32.mxu0 0.0
  %v1089 = vand.u32 %v167, 4294901760
  %1090 = vmatmul.mubr.f32.gmra.mxu0 %v1089
  %v1091 = vpop.f32.mrf.mxu0
  %v1092 = vadd.f32 %v915, %v1091
  %v1093 = vpop.f32.mrf.mxu0
  %1094 = vmatprep.mubr.f32.mxu0 0.0
  %v1095 = vand.u32 %v170, 4294901760
  %1096 = vmatmul.mubr.f32.gmra.mxu0 %v1095
  %v1097 = vpop.f32.mrf.mxu0
  %v1098 = vadd.f32 %v923, %v1097
  %v1099 = vpop.f32.mrf.mxu0
  %1100 = vmatprep.mubr.f32.mxu0 0.0
  %v1101 = vand.u32 %v173, 4294901760
  %1102 = vmatmul.mubr.f32.gmra.mxu0 %v1101
  %v1103 = vpop.f32.mrf.mxu0
  %v1104 = vadd.f32 %v931, %v1103
  %v1105 = vpop.f32.mrf.mxu0
  %1106 = vmatprep.mubr.f32.mxu0 0.0
  %v1107 = vand.u32 %v176, 4294901760
  %1108 = vmatmul.mubr.f32.gmra.mxu0 %v1107
  %v1109 = vpop.f32.mrf.mxu0
  %v1110 = vadd.f32 %v939, %v1109
  %v1111 = vpop.f32.mrf.mxu0
  %1112 = vmatprep.mubr.f32.mxu0 0.0
  %v1113 = vand.u32 %v179, 4294901760
  %1114 = vmatmul.mubr.f32.gmra.mxu0 %v1113
  %v1115 = vpop.f32.mrf.mxu0
  %v1116 = vadd.f32 %v947, %v1115
  %v1117 = vpop.f32.mrf.mxu0
  %1118 = vmatprep.mubr.f32.mxu0 0.0
  %v1119 = vand.u32 %v182, 4294901760
  %1120 = vmatmul.mubr.f32.gmra.mxu0 %v1119
  %v1121 = vpop.f32.mrf.mxu0
  %v1122 = vadd.f32 %v955, %v1121
  %v1123 = vpop.f32.mrf.mxu0
  %1124 = vdwg.mxu0
  %1125 = vmatprep.subr.mxu0 0.0
  %1126 = vmatpush1.msra.mxu0 0.0
  %1127 = vmatprep.subr.mxu0 0.0
  %1128 = vmatpush1.msra.mxu0 0.0
  %1129 = vmatprep.subr.mxu0 0.0
  %1130 = vmatpush1.msra.mxu0 0.0
  %1131 = vmatprep.subr.mxu0 0.0
  %1132 = vmatpush1.msra.mxu0 0.0
  %1133 = vmatprep.subr.mxu0 0.0
  %1134 = vmatpush1.msra.mxu0 0.0
  %1135 = vmatprep.subr.mxu0 0.0
  %1136 = vmatpush1.msra.mxu0 0.0
  %1137 = vmatprep.subr.mxu0 0.0
  %1138 = vmatpush1.msra.mxu0 0.0
  %1139 = vmatprep.subr.mxu0 0.0
  %1140 = vmatpush1.msra.mxu0 0.0
  %1141 = vmatprep.subr.mxu0 0.0
  %1142 = vmatpush1.msra.mxu0 0.0
  %1143 = vmatprep.subr.mxu0 0.0
  %1144 = vmatpush1.msra.mxu0 0.0
  %1145 = vmatprep.subr.mxu0 0.0
  %1146 = vmatpush1.msra.mxu0 0.0
  %1147 = vmatprep.subr.mxu0 0.0
  %1148 = vmatpush1.msra.mxu0 0.0
  %1149 = vmatprep.subr.mxu0 0.0
  %1150 = vmatpush1.msra.mxu0 0.0
  %1151 = vmatprep.subr.mxu0 0.0
  %1152 = vmatpush1.msra.mxu0 0.0
  %1153 = vmatprep.subr.mxu0 0.0
  %v1154 = vand.u32 %v22, 4294901760
  %1155 = vmatpush1.msra.mxu0 %v1154
  %1156 = vmatprep.subr.mxu0 0.0
  %v1157 = vand.u32 %v21, 4294901760
  %1158 = vmatpush1.msra.mxu0 %v1157
  %1159 = vmatprep.subr.mxu0 0.0
  %1160 = vmatpush2.msra.mxu0 0.0
  %1161 = vmatprep.subr.mxu0 0.0
  %1162 = vmatpush2.msra.mxu0 0.0
  %1163 = vmatprep.subr.mxu0 0.0
  %1164 = vmatpush2.msra.mxu0 0.0
  %1165 = vmatprep.subr.mxu0 0.0
  %1166 = vmatpush2.msra.mxu0 0.0
  %1167 = vmatprep.subr.mxu0 0.0
  %1168 = vmatpush2.msra.mxu0 0.0
  %1169 = vmatprep.subr.mxu0 0.0
  %1170 = vmatpush2.msra.mxu0 0.0
  %1171 = vmatprep.subr.mxu0 0.0
  %1172 = vmatpush2.msra.mxu0 0.0
  %1173 = vmatprep.subr.mxu0 0.0
  %1174 = vmatpush2.msra.mxu0 0.0
  %1175 = vmatprep.subr.mxu0 0.0
  %1176 = vmatpush2.msra.mxu0 0.0
  %1177 = vmatprep.subr.mxu0 0.0
  %1178 = vmatpush2.msra.mxu0 0.0
  %1179 = vmatprep.subr.mxu0 0.0
  %1180 = vmatpush2.msra.mxu0 0.0
  %1181 = vmatprep.subr.mxu0 0.0
  %1182 = vmatpush2.msra.mxu0 0.0
  %1183 = vmatprep.subr.mxu0 0.0
  %1184 = vmatpush2.msra.mxu0 0.0
  %1185 = vmatprep.subr.mxu0 0.0
  %1186 = vmatpush2.msra.mxu0 0.0
  %1187 = vmatprep.subr.mxu0 0.0
  %1188 = vmatpush2.msra.mxu0 0.0
  %1189 = vmatprep.subr.mxu0 0.0
  %1190 = vmatpush2.msra.mxu0 0.0
  %1191 = vmatprep.mubr.f32.mxu0 0.0
  %v1192 = vand.u32 %v137, 4294901760
  %1193 = vmatmul.mubr.f32.gmra.mxu0 %v1192
  %v1194 = vpop.f32.mrf.mxu0
  %v1195 = vadd.f32 %v1032, %v1194
  %v1196 = vpop.f32.mrf.mxu0
  %1197 = vmatprep.mubr.f32.mxu0 0.0
  %v1198 = vand.u32 %v140, 4294901760
  %1199 = vmatmul.mubr.f32.gmra.mxu0 %v1198
  %v1200 = vpop.f32.mrf.mxu0
  %v1201 = vadd.f32 %v1038, %v1200
  %v1202 = vpop.f32.mrf.mxu0
  %1203 = vmatprep.mubr.f32.mxu0 0.0
  %v1204 = vand.u32 %v143, 4294901760
  %1205 = vmatmul.mubr.f32.gmra.mxu0 %v1204
  %v1206 = vpop.f32.mrf.mxu0
  %v1207 = vadd.f32 %v1044, %v1206
  %v1208 = vpop.f32.mrf.mxu0
  %1209 = vmatprep.mubr.f32.mxu0 0.0
  %v1210 = vand.u32 %v146, 4294901760
  %1211 = vmatmul.mubr.f32.gmra.mxu0 %v1210
  %v1212 = vpop.f32.mrf.mxu0
  %v1213 = vadd.f32 %v1050, %v1212
  %v1214 = vpop.f32.mrf.mxu0
  %1215 = vmatprep.mubr.f32.mxu0 0.0
  %v1216 = vand.u32 %v149, 4294901760
  %1217 = vmatmul.mubr.f32.gmra.mxu0 %v1216
  %v1218 = vpop.f32.mrf.mxu0
  %v1219 = vadd.f32 %v1056, %v1218
  %v1220 = vpop.f32.mrf.mxu0
  %1221 = vmatprep.mubr.f32.mxu0 0.0
  %v1222 = vand.u32 %v152, 4294901760
  %1223 = vmatmul.mubr.f32.gmra.mxu0 %v1222
  %v1224 = vpop.f32.mrf.mxu0
  %v1225 = vadd.f32 %v1062, %v1224
  %v1226 = vpop.f32.mrf.mxu0
  %1227 = vmatprep.mubr.f32.mxu0 0.0
  %v1228 = vand.u32 %v155, 4294901760
  %1229 = vmatmul.mubr.f32.gmra.mxu0 %v1228
  %v1230 = vpop.f32.mrf.mxu0
  %v1231 = vadd.f32 %v1068, %v1230
  %v1232 = vpop.f32.mrf.mxu0
  %1233 = vmatprep.mubr.f32.mxu0 0.0
  %v1234 = vand.u32 %v158, 4294901760
  %1235 = vmatmul.mubr.f32.gmra.mxu0 %v1234
  %v1236 = vpop.f32.mrf.mxu0
  %v1237 = vadd.f32 %v1074, %v1236
  %v1238 = vpop.f32.mrf.mxu0
  %1239 = vmatprep.mubr.f32.mxu0 0.0
  %v1240 = vand.u32 %v161, 4294901760
  %1241 = vmatmul.mubr.f32.gmra.mxu0 %v1240
  %v1242 = vpop.f32.mrf.mxu0
  %v1243 = vadd.f32 %v1080, %v1242
  %v1244 = vpop.f32.mrf.mxu0
  %1245 = vmatprep.mubr.f32.mxu0 0.0
  %v1246 = vand.u32 %v164, 4294901760
  %1247 = vmatmul.mubr.f32.gmra.mxu0 %v1246
  %v1248 = vpop.f32.mrf.mxu0
  %v1249 = vadd.f32 %v1086, %v1248
  %v1250 = vpop.f32.mrf.mxu0
  %1251 = vmatprep.mubr.f32.mxu0 0.0
  %v1252 = vand.u32 %v167, 4294901760
  %1253 = vmatmul.mubr.f32.gmra.mxu0 %v1252
  %v1254 = vpop.f32.mrf.mxu0
  %v1255 = vadd.f32 %v1092, %v1254
  %v1256 = vpop.f32.mrf.mxu0
  %1257 = vmatprep.mubr.f32.mxu0 0.0
  %v1258 = vand.u32 %v170, 4294901760
  %1259 = vmatmul.mubr.f32.gmra.mxu0 %v1258
  %v1260 = vpop.f32.mrf.mxu0
  %v1261 = vadd.f32 %v1098, %v1260
  %v1262 = vpop.f32.mrf.mxu0
  %1263 = vmatprep.mubr.f32.mxu0 0.0
  %v1264 = vand.u32 %v173, 4294901760
  %1265 = vmatmul.mubr.f32.gmra.mxu0 %v1264
  %v1266 = vpop.f32.mrf.mxu0
  %v1267 = vadd.f32 %v1104, %v1266
  %v1268 = vpop.f32.mrf.mxu0
  %1269 = vmatprep.mubr.f32.mxu0 0.0
  %v1270 = vand.u32 %v176, 4294901760
  %1271 = vmatmul.mubr.f32.gmra.mxu0 %v1270
  %v1272 = vpop.f32.mrf.mxu0
  %v1273 = vadd.f32 %v1110, %v1272
  %v1274 = vpop.f32.mrf.mxu0
  %1275 = vmatprep.mubr.f32.mxu0 0.0
  %v1276 = vand.u32 %v179, 4294901760
  %1277 = vmatmul.mubr.f32.gmra.mxu0 %v1276
  %v1278 = vpop.f32.mrf.mxu0
  %v1279 = vadd.f32 %v1116, %v1278
  %v1280 = vpop.f32.mrf.mxu0
  %1281 = vmatprep.mubr.f32.mxu0 0.0
  %v1282 = vand.u32 %v182, 4294901760
  %1283 = vmatmul.mubr.f32.gmra.mxu0 %v1282
  %v1284 = vpop.f32.mrf.mxu0
  %v1285 = vadd.f32 %v1122, %v1284
  %v1286 = vpop.f32.mrf.mxu0
  %1287 = vdwg.mxu0
  %v1288 = vmul.f32 %v1195, %v1195
  %v1289 = vmul.f32 %v1201, %v1201
  %v1290 = vmul.f32 %v1207, %v1207
  %v1291 = vmul.f32 %v1213, %v1213
  %v1292 = vmul.f32 %v1219, %v1219
  %v1293 = vmul.f32 %v1225, %v1225
  %v1294 = vmul.f32 %v1231, %v1231
  %v1295 = vmul.f32 %v1237, %v1237
  %v1296 = vmul.f32 %v1243, %v1243
  %v1297 = vmul.f32 %v1249, %v1249
  %v1298 = vmul.f32 %v1255, %v1255
  %v1299 = vmul.f32 %v1261, %v1261
  %v1300 = vmul.f32 %v1267, %v1267
  %v1301 = vmul.f32 %v1273, %v1273
  %v1302 = vmul.f32 %v1279, %v1279
  %v1303 = vmul.f32 %v1285, %v1285
  %v1304 = vmul.f32 %v1195, %v1288
  %v1305 = vmul.f32 %v1201, %v1289
  %v1306 = vmul.f32 %v1207, %v1290
  %v1307 = vmul.f32 %v1213, %v1291
  %v1308 = vmul.f32 %v1219, %v1292
  %v1309 = vmul.f32 %v1225, %v1293
  %v1310 = vmul.f32 %v1231, %v1294
  %v1311 = vmul.f32 %v1237, %v1295
  %v1312 = vmul.f32 %v1243, %v1296
  %v1313 = vmul.f32 %v1249, %v1297
  %v1314 = vmul.f32 %v1255, %v1298
  %v1315 = vmul.f32 %v1261, %v1299
  %v1316 = vmul.f32 %v1267, %v1300
  %v1317 = vmul.f32 %v1273, %v1301
  %v1318 = vmul.f32 %v1279, %v1302
  %v1319 = vmul.f32 %v1285, %v1303
  %v1320 = vmul.f32 %v1304, 0.044715
  %v1321 = vmul.f32 %v1305, 0.044715
  %v1322 = vmul.f32 %v1306, 0.044715
  %v1323 = vmul.f32 %v1307, 0.044715
  %v1324 = vmul.f32 %v1308, 0.044715
  %v1325 = vmul.f32 %v1309, 0.044715
  %v1326 = vmul.f32 %v1310, 0.044715
  %v1327 = vmul.f32 %v1311, 0.044715
  %v1328 = vmul.f32 %v1312, 0.044715
  %v1329 = vmul.f32 %v1313, 0.044715
  %v1330 = vmul.f32 %v1314, 0.044715
  %v1331 = vmul.f32 %v1315, 0.044715
  %v1332 = vmul.f32 %v1316, 0.044715
  %v1333 = vmul.f32 %v1317, 0.044715
  %v1334 = vmul.f32 %v1318, 0.044715
  %v1335 = vmul.f32 %v1319, 0.044715
  %v1336 = vadd.f32 %v1195, %v1320
  %v1337 = vadd.f32 %v1201, %v1321
  %v1338 = vadd.f32 %v1207, %v1322
  %v1339 = vadd.f32 %v1213, %v1323
  %v1340 = vadd.f32 %v1219, %v1324
  %v1341 = vadd.f32 %v1225, %v1325
  %v1342 = vadd.f32 %v1231, %v1326
  %v1343 = vadd.f32 %v1237, %v1327
  %v1344 = vadd.f32 %v1243, %v1328
  %v1345 = vadd.f32 %v1249, %v1329
  %v1346 = vadd.f32 %v1255, %v1330
  %v1347 = vadd.f32 %v1261, %v1331
  %v1348 = vadd.f32 %v1267, %v1332
  %v1349 = vadd.f32 %v1273, %v1333
  %v1350 = vadd.f32 %v1279, %v1334
  %v1351 = vadd.f32 %v1285, %v1335
  %v1352 = vmul.f32 %v1336, 0.7978846
  %v1353 = vmul.f32 %v1337, 0.7978846
  %v1354 = vmul.f32 %v1338, 0.7978846
  %v1355 = vmul.f32 %v1339, 0.7978846
  %v1356 = vmul.f32 %v1340, 0.7978846
  %v1357 = vmul.f32 %v1341, 0.7978846
  %v1358 = vmul.f32 %v1342, 0.7978846
  %v1359 = vmul.f32 %v1343, 0.7978846
  %v1360 = vmul.f32 %v1344, 0.7978846
  %v1361 = vmul.f32 %v1345, 0.7978846
  %v1362 = vmul.f32 %v1346, 0.7978846
  %v1363 = vmul.f32 %v1347, 0.7978846
  %v1364 = vmul.f32 %v1348, 0.7978846
  %v1365 = vmul.f32 %v1349, 0.7978846
  %v1366 = vmul.f32 %v1350, 0.7978846
  %v1367 = vmul.f32 %v1351, 0.7978846
  %v1368 = vtanh.pop %v1352
  %v1369 = vtanh.pop %v1353
  %v1370 = vtanh.pop %v1354
  %v1371 = vtanh.pop %v1355
  %v1372 = vtanh.pop %v1356
  %v1373 = vtanh.pop %v1357
  %v1374 = vtanh.pop %v1358
  %v1375 = vtanh.pop %v1359
  %v1376 = vtanh.pop %v1360
  %v1377 = vtanh.pop %v1361
  %v1378 = vtanh.pop %v1362
  %v1379 = vtanh.pop %v1363
  %v1380 = vtanh.pop %v1364
  %v1381 = vtanh.pop %v1365
  %v1382 = vtanh.pop %v1366
  %v1383 = vtanh.pop %v1367
  %v1384 = vadd.f32 %v1368, 1.0
  %v1385 = vadd.f32 %v1369, 1.0
  %v1386 = vadd.f32 %v1370, 1.0
  %v1387 = vadd.f32 %v1371, 1.0
  %v1388 = vadd.f32 %v1372, 1.0
  %v1389 = vadd.f32 %v1373, 1.0
  %v1390 = vadd.f32 %v1374, 1.0
  %v1391 = vadd.f32 %v1375, 1.0
  %v1392 = vadd.f32 %v1376, 1.0
  %v1393 = vadd.f32 %v1377, 1.0
  %v1394 = vadd.f32 %v1378, 1.0
  %v1395 = vadd.f32 %v1379, 1.0
  %v1396 = vadd.f32 %v1380, 1.0
  %v1397 = vadd.f32 %v1381, 1.0
  %v1398 = vadd.f32 %v1382, 1.0
  %v1399 = vadd.f32 %v1383, 1.0
  %v1400 = vmul.f32 %v1384, 0.5
  %v1401 = vmul.f32 %v1385, 0.5
  %v1402 = vmul.f32 %v1386, 0.5
  %v1403 = vmul.f32 %v1387, 0.5
  %v1404 = vmul.f32 %v1388, 0.5
  %v1405 = vmul.f32 %v1389, 0.5
  %v1406 = vmul.f32 %v1390, 0.5
  %v1407 = vmul.f32 %v1391, 0.5
  %v1408 = vmul.f32 %v1392, 0.5
  %v1409 = vmul.f32 %v1393, 0.5
  %v1410 = vmul.f32 %v1394, 0.5
  %v1411 = vmul.f32 %v1395, 0.5
  %v1412 = vmul.f32 %v1396, 0.5
  %v1413 = vmul.f32 %v1397, 0.5
  %v1414 = vmul.f32 %v1398, 0.5
  %v1415 = vmul.f32 %v1399, 0.5
  %v1416 = vmul.f32 %v1195, %v1400
  %v1417 = vmul.f32 %v1201, %v1401
  %v1418 = vmul.f32 %v1207, %v1402
  %v1419 = vmul.f32 %v1213, %v1403
  %v1420 = vmul.f32 %v1219, %v1404
  %v1421 = vmul.f32 %v1225, %v1405
  %v1422 = vmul.f32 %v1231, %v1406
  %v1423 = vmul.f32 %v1237, %v1407
  %v1424 = vmul.f32 %v1243, %v1408
  %v1425 = vmul.f32 %v1249, %v1409
  %v1426 = vmul.f32 %v1255, %v1410
  %v1427 = vmul.f32 %v1261, %v1411
  %v1428 = vmul.f32 %v1267, %v1412
  %v1429 = vmul.f32 %v1273, %v1413
  %v1430 = vmul.f32 %v1279, %v1414
  %v1431 = vmul.f32 %v1285, %v1415
  %v1432 = vld [vmem:[%s3] sm:$0x3]
  %1433 = vmatprep.subr.mxu0 0.0
  %v1434 = vand.u32 %v1431, 4294901760
  %1435 = vmatpush1.msra.mxu0 %v1434
  %1436 = vmatprep.subr.mxu0 0.0
  %v1437 = vand.u32 %v1430, 4294901760
  %1438 = vmatpush1.msra.mxu0 %v1437
  %1439 = vmatprep.subr.mxu0 0.0
  %v1440 = vand.u32 %v1429, 4294901760
  %1441 = vmatpush1.msra.mxu0 %v1440
  %1442 = vmatprep.subr.mxu0 0.0
  %v1443 = vand.u32 %v1428, 4294901760
  %1444 = vmatpush1.msra.mxu0 %v1443
  %1445 = vmatprep.subr.mxu0 0.0
  %v1446 = vand.u32 %v1427, 4294901760
  %1447 = vmatpush1.msra.mxu0 %v1446
  %1448 = vmatprep.subr.mxu0 0.0
  %v1449 = vand.u32 %v1426, 4294901760
  %1450 = vmatpush1.msra.mxu0 %v1449
  %1451 = vmatprep.subr.mxu0 0.0
  %v1452 = vand.u32 %v1425, 4294901760
  %1453 = vmatpush1.msra.mxu0 %v1452
  %1454 = vmatprep.subr.mxu0 0.0
  %v1455 = vand.u32 %v1424, 4294901760
  %1456 = vmatpush1.msra.mxu0 %v1455
  %1457 = vmatprep.subr.mxu0 0.0
  %v1458 = vand.u32 %v1423, 4294901760
  %1459 = vmatpush1.msra.mxu0 %v1458
  %1460 = vmatprep.subr.mxu0 0.0
  %v1461 = vand.u32 %v1422, 4294901760
  %1462 = vmatpush1.msra.mxu0 %v1461
  %1463 = vmatprep.subr.mxu0 0.0
  %v1464 = vand.u32 %v1421, 4294901760
  %1465 = vmatpush1.msra.mxu0 %v1464
  %1466 = vmatprep.subr.mxu0 0.0
  %v1467 = vand.u32 %v1420, 4294901760
  %1468 = vmatpush1.msra.mxu0 %v1467
  %1469 = vmatprep.subr.mxu0 0.0
  %v1470 = vand.u32 %v1419, 4294901760
  %1471 = vmatpush1.msra.mxu0 %v1470
  %1472 = vmatprep.subr.mxu0 0.0
  %v1473 = vand.u32 %v1418, 4294901760
  %1474 = vmatpush1.msra.mxu0 %v1473
  %1475 = vmatprep.subr.mxu0 0.0
  %v1476 = vand.u32 %v1417, 4294901760
  %1477 = vmatpush1.msra.mxu0 %v1476
  %1478 = vmatprep.subr.mxu0 0.0
  %v1479 = vand.u32 %v1416, 4294901760
  %1480 = vmatpush1.msra.mxu0 %v1479
  %1481 = vmatprep.subr.mxu0 0.0
  %1482 = vmatpush2.msra.mxu0 0.0
  %1483 = vmatprep.subr.mxu0 0.0
  %1484 = vmatpush2.msra.mxu0 0.0
  %1485 = vmatprep.subr.mxu0 0.0
  %1486 = vmatpush2.msra.mxu0 0.0
  %1487 = vmatprep.subr.mxu0 0.0
  %1488 = vmatpush2.msra.mxu0 0.0
  %1489 = vmatprep.subr.mxu0 0.0
  %1490 = vmatpush2.msra.mxu0 0.0
  %1491 = vmatprep.subr.mxu0 0.0
  %1492 = vmatpush2.msra.mxu0 0.0
  %1493 = vmatprep.subr.mxu0 0.0
  %1494 = vmatpush2.msra.mxu0 0.0
  %1495 = vmatprep.subr.mxu0 0.0
  %1496 = vmatpush2.msra.mxu0 0.0
  %1497 = vmatprep.subr.mxu0 0.0
  %1498 = vmatpush2.msra.mxu0 0.0
  %1499 = vmatprep.subr.mxu0 0.0
  %1500 = vmatpush2.msra.mxu0 0.0
  %1501 = vmatprep.subr.mxu0 0.0
  %1502 = vmatpush2.msra.mxu0 0.0
  %1503 = vmatprep.subr.mxu0 0.0
  %1504 = vmatpush2.msra.mxu0 0.0
  %1505 = vmatprep.subr.mxu0 0.0
  %1506 = vmatpush2.msra.mxu0 0.0
  %1507 = vmatprep.subr.mxu0 0.0
  %1508 = vmatpush2.msra.mxu0 0.0
  %1509 = vmatprep.subr.mxu0 0.0
  %1510 = vmatpush2.msra.mxu0 0.0
  %1511 = vmatprep.subr.mxu0 0.0
  %1512 = vmatpush2.msra.mxu0 0.0
  %1513 = vmatprep.mubr.f32.mxu0 0.0
  %v1514 = vand.u32 %v1432, 4294901760
  %v1515 = vsub.f32 %v1432, %v1514
  %v1516 = vand.u32 %v1515, 4294901760
  %v1517 = vsub.f32 %v1515, %v1516
  %v1518 = vand.u32 %v1517, 4294901760
  %1519 = vmatmul.mubr.f32.gmra.mxu0 %v1518
  %v1520 = vpop.f32.mrf.mxu0
  %v1521 = vadd.f32 0.0, %v1520
  %v1522 = vpop.f32.mrf.mxu0
  %1523 = vdwg.mxu0
  %1524 = vmatprep.subr.mxu0 0.0
  %v1525 = vand.u32 %v1431, 4294901760
  %v1526 = vsub.f32 %v1431, %v1525
  %v1527 = vand.u32 %v1526, 4294901760
  %v1528 = vsub.f32 %v1526, %v1527
  %v1529 = vand.u32 %v1528, 4294901760
  %1530 = vmatpush1.msra.mxu0 %v1529
  %1531 = vmatprep.subr.mxu0 0.0
  %v1532 = vand.u32 %v1430, 4294901760
  %v1533 = vsub.f32 %v1430, %v1532
  %v1534 = vand.u32 %v1533, 4294901760
  %v1535 = vsub.f32 %v1533, %v1534
  %v1536 = vand.u32 %v1535, 4294901760
  %1537 = vmatpush1.msra.mxu0 %v1536
  %1538 = vmatprep.subr.mxu0 0.0
  %v1539 = vand.u32 %v1429, 4294901760
  %v1540 = vsub.f32 %v1429, %v1539
  %v1541 = vand.u32 %v1540, 4294901760
  %v1542 = vsub.f32 %v1540, %v1541
  %v1543 = vand.u32 %v1542, 4294901760
  %1544 = vmatpush1.msra.mxu0 %v1543
  %1545 = vmatprep.subr.mxu0 0.0
  %v1546 = vand.u32 %v1428, 4294901760
  %v1547 = vsub.f32 %v1428, %v1546
  %v1548 = vand.u32 %v1547, 4294901760
  %v1549 = vsub.f32 %v1547, %v1548
  %v1550 = vand.u32 %v1549, 4294901760
  %1551 = vmatpush1.msra.mxu0 %v1550
  %1552 = vmatprep.subr.mxu0 0.0
  %v1553 = vand.u32 %v1427, 4294901760
  %v1554 = vsub.f32 %v1427, %v1553
  %v1555 = vand.u32 %v1554, 4294901760
  %v1556 = vsub.f32 %v1554, %v1555
  %v1557 = vand.u32 %v1556, 4294901760
  %1558 = vmatpush1.msra.mxu0 %v1557
  %1559 = vmatprep.subr.mxu0 0.0
  %v1560 = vand.u32 %v1426, 4294901760
  %v1561 = vsub.f32 %v1426, %v1560
  %v1562 = vand.u32 %v1561, 4294901760
  %v1563 = vsub.f32 %v1561, %v1562
  %v1564 = vand.u32 %v1563, 4294901760
  %1565 = vmatpush1.msra.mxu0 %v1564
  %1566 = vmatprep.subr.mxu0 0.0
  %v1567 = vand.u32 %v1425, 4294901760
  %v1568 = vsub.f32 %v1425, %v1567
  %v1569 = vand.u32 %v1568, 4294901760
  %v1570 = vsub.f32 %v1568, %v1569
  %v1571 = vand.u32 %v1570, 4294901760
  %1572 = vmatpush1.msra.mxu0 %v1571
  %1573 = vmatprep.subr.mxu0 0.0
  %v1574 = vand.u32 %v1424, 4294901760
  %v1575 = vsub.f32 %v1424, %v1574
  %v1576 = vand.u32 %v1575, 4294901760
  %v1577 = vsub.f32 %v1575, %v1576
  %v1578 = vand.u32 %v1577, 4294901760
  %1579 = vmatpush1.msra.mxu0 %v1578
  %1580 = vmatprep.subr.mxu0 0.0
  %v1581 = vand.u32 %v1423, 4294901760
  %v1582 = vsub.f32 %v1423, %v1581
  %v1583 = vand.u32 %v1582, 4294901760
  %v1584 = vsub.f32 %v1582, %v1583
  %v1585 = vand.u32 %v1584, 4294901760
  %1586 = vmatpush1.msra.mxu0 %v1585
  %1587 = vmatprep.subr.mxu0 0.0
  %v1588 = vand.u32 %v1422, 4294901760
  %v1589 = vsub.f32 %v1422, %v1588
  %v1590 = vand.u32 %v1589, 4294901760
  %v1591 = vsub.f32 %v1589, %v1590
  %v1592 = vand.u32 %v1591, 4294901760
  %1593 = vmatpush1.msra.mxu0 %v1592
  %1594 = vmatprep.subr.mxu0 0.0
  %v1595 = vand.u32 %v1421, 4294901760
  %v1596 = vsub.f32 %v1421, %v1595
  %v1597 = vand.u32 %v1596, 4294901760
  %v1598 = vsub.f32 %v1596, %v1597
  %v1599 = vand.u32 %v1598, 4294901760
  %1600 = vmatpush1.msra.mxu0 %v1599
  %1601 = vmatprep.subr.mxu0 0.0
  %v1602 = vand.u32 %v1420, 4294901760
  %v1603 = vsub.f32 %v1420, %v1602
  %v1604 = vand.u32 %v1603, 4294901760
  %v1605 = vsub.f32 %v1603, %v1604
  %v1606 = vand.u32 %v1605, 4294901760
  %1607 = vmatpush1.msra.mxu0 %v1606
  %1608 = vmatprep.subr.mxu0 0.0
  %v1609 = vand.u32 %v1419, 4294901760
  %v1610 = vsub.f32 %v1419, %v1609
  %v1611 = vand.u32 %v1610, 4294901760
  %v1612 = vsub.f32 %v1610, %v1611
  %v1613 = vand.u32 %v1612, 4294901760
  %1614 = vmatpush1.msra.mxu0 %v1613
  %1615 = vmatprep.subr.mxu0 0.0
  %v1616 = vand.u32 %v1418, 4294901760
  %v1617 = vsub.f32 %v1418, %v1616
  %v1618 = vand.u32 %v1617, 4294901760
  %v1619 = vsub.f32 %v1617, %v1618
  %v1620 = vand.u32 %v1619, 4294901760
  %1621 = vmatpush1.msra.mxu0 %v1620
  %1622 = vmatprep.subr.mxu0 0.0
  %v1623 = vand.u32 %v1417, 4294901760
  %v1624 = vsub.f32 %v1417, %v1623
  %v1625 = vand.u32 %v1624, 4294901760
  %v1626 = vsub.f32 %v1624, %v1625
  %v1627 = vand.u32 %v1626, 4294901760
  %1628 = vmatpush1.msra.mxu0 %v1627
  %1629 = vmatprep.subr.mxu0 0.0
  %v1630 = vand.u32 %v1416, 4294901760
  %v1631 = vsub.f32 %v1416, %v1630
  %v1632 = vand.u32 %v1631, 4294901760
  %v1633 = vsub.f32 %v1631, %v1632
  %v1634 = vand.u32 %v1633, 4294901760
  %1635 = vmatpush1.msra.mxu0 %v1634
  %1636 = vmatprep.subr.mxu0 0.0
  %1637 = vmatpush2.msra.mxu0 0.0
  %1638 = vmatprep.subr.mxu0 0.0
  %1639 = vmatpush2.msra.mxu0 0.0
  %1640 = vmatprep.subr.mxu0 0.0
  %1641 = vmatpush2.msra.mxu0 0.0
  %1642 = vmatprep.subr.mxu0 0.0
  %1643 = vmatpush2.msra.mxu0 0.0
  %1644 = vmatprep.subr.mxu0 0.0
  %1645 = vmatpush2.msra.mxu0 0.0
  %1646 = vmatprep.subr.mxu0 0.0
  %1647 = vmatpush2.msra.mxu0 0.0
  %1648 = vmatprep.subr.mxu0 0.0
  %1649 = vmatpush2.msra.mxu0 0.0
  %1650 = vmatprep.subr.mxu0 0.0
  %1651 = vmatpush2.msra.mxu0 0.0
  %1652 = vmatprep.subr.mxu0 0.0
  %1653 = vmatpush2.msra.mxu0 0.0
  %1654 = vmatprep.subr.mxu0 0.0
  %1655 = vmatpush2.msra.mxu0 0.0
  %1656 = vmatprep.subr.mxu0 0.0
  %1657 = vmatpush2.msra.mxu0 0.0
  %1658 = vmatprep.subr.mxu0 0.0
  %1659 = vmatpush2.msra.mxu0 0.0
  %1660 = vmatprep.subr.mxu0 0.0
  %1661 = vmatpush2.msra.mxu0 0.0
  %1662 = vmatprep.subr.mxu0 0.0
  %1663 = vmatpush2.msra.mxu0 0.0
  %1664 = vmatprep.subr.mxu0 0.0
  %1665 = vmatpush2.msra.mxu0 0.0
  %1666 = vmatprep.subr.mxu0 0.0
  %1667 = vmatpush2.msra.mxu0 0.0
  %1668 = vmatprep.mubr.f32.mxu0 0.0
  %v1669 = vand.u32 %v1432, 4294901760
  %1670 = vmatmul.mubr.f32.gmra.mxu0 %v1669
  %v1671 = vpop.f32.mrf.mxu0
  %v1672 = vadd.f32 %v1521, %v1671
  %v1673 = vpop.f32.mrf.mxu0
  %1674 = vdwg.mxu0
  %1675 = vmatprep.subr.mxu0 0.0
  %v1676 = vand.u32 %v1431, 4294901760
  %v1677 = vsub.f32 %v1431, %v1676
  %1678 = vmatpush1.msra.mxu0 %v1677
  %1679 = vmatprep.subr.mxu0 0.0
  %v1680 = vand.u32 %v1430, 4294901760
  %v1681 = vsub.f32 %v1430, %v1680
  %1682 = vmatpush1.msra.mxu0 %v1681
  %1683 = vmatprep.subr.mxu0 0.0
  %v1684 = vand.u32 %v1429, 4294901760
  %v1685 = vsub.f32 %v1429, %v1684
  %1686 = vmatpush1.msra.mxu0 %v1685
  %1687 = vmatprep.subr.mxu0 0.0
  %v1688 = vand.u32 %v1428, 4294901760
  %v1689 = vsub.f32 %v1428, %v1688
  %1690 = vmatpush1.msra.mxu0 %v1689
  %1691 = vmatprep.subr.mxu0 0.0
  %v1692 = vand.u32 %v1427, 4294901760
  %v1693 = vsub.f32 %v1427, %v1692
  %1694 = vmatpush1.msra.mxu0 %v1693
  %1695 = vmatprep.subr.mxu0 0.0
  %v1696 = vand.u32 %v1426, 4294901760
  %v1697 = vsub.f32 %v1426, %v1696
  %1698 = vmatpush1.msra.mxu0 %v1697
  %1699 = vmatprep.subr.mxu0 0.0
  %v1700 = vand.u32 %v1425, 4294901760
  %v1701 = vsub.f32 %v1425, %v1700
  %1702 = vmatpush1.msra.mxu0 %v1701
  %1703 = vmatprep.subr.mxu0 0.0
  %v1704 = vand.u32 %v1424, 4294901760
  %v1705 = vsub.f32 %v1424, %v1704
  %1706 = vmatpush1.msra.mxu0 %v1705
  %1707 = vmatprep.subr.mxu0 0.0
  %v1708 = vand.u32 %v1423, 4294901760
  %v1709 = vsub.f32 %v1423, %v1708
  %1710 = vmatpush1.msra.mxu0 %v1709
  %1711 = vmatprep.subr.mxu0 0.0
  %v1712 = vand.u32 %v1422, 4294901760
  %v1713 = vsub.f32 %v1422, %v1712
  %1714 = vmatpush1.msra.mxu0 %v1713
  %1715 = vmatprep.subr.mxu0 0.0
  %v1716 = vand.u32 %v1421, 4294901760
  %v1717 = vsub.f32 %v1421, %v1716
  %1718 = vmatpush1.msra.mxu0 %v1717
  %1719 = vmatprep.subr.mxu0 0.0
  %v1720 = vand.u32 %v1420, 4294901760
  %v1721 = vsub.f32 %v1420, %v1720
  %1722 = vmatpush1.msra.mxu0 %v1721
  %1723 = vmatprep.subr.mxu0 0.0
  %v1724 = vand.u32 %v1419, 4294901760
  %v1725 = vsub.f32 %v1419, %v1724
  %1726 = vmatpush1.msra.mxu0 %v1725
  %1727 = vmatprep.subr.mxu0 0.0
  %v1728 = vand.u32 %v1418, 4294901760
  %v1729 = vsub.f32 %v1418, %v1728
  %1730 = vmatpush1.msra.mxu0 %v1729
  %1731 = vmatprep.subr.mxu0 0.0
  %v1732 = vand.u32 %v1417, 4294901760
  %v1733 = vsub.f32 %v1417, %v1732
  %1734 = vmatpush1.msra.mxu0 %v1733
  %1735 = vmatprep.subr.mxu0 0.0
  %v1736 = vand.u32 %v1416, 4294901760
  %v1737 = vsub.f32 %v1416, %v1736
  %1738 = vmatpush1.msra.mxu0 %v1737
  %1739 = vmatprep.subr.mxu0 0.0
  %1740 = vmatpush2.msra.mxu0 0.0
  %1741 = vmatprep.subr.mxu0 0.0
  %1742 = vmatpush2.msra.mxu0 0.0
  %1743 = vmatprep.subr.mxu0 0.0
  %1744 = vmatpush2.msra.mxu0 0.0
  %1745 = vmatprep.subr.mxu0 0.0
  %1746 = vmatpush2.msra.mxu0 0.0
  %1747 = vmatprep.subr.mxu0 0.0
  %1748 = vmatpush2.msra.mxu0 0.0
  %1749 = vmatprep.subr.mxu0 0.0
  %1750 = vmatpush2.msra.mxu0 0.0
  %1751 = vmatprep.subr.mxu0 0.0
  %1752 = vmatpush2.msra.mxu0 0.0
  %1753 = vmatprep.subr.mxu0 0.0
  %1754 = vmatpush2.msra.mxu0 0.0
  %1755 = vmatprep.subr.mxu0 0.0
  %1756 = vmatpush2.msra.mxu0 0.0
  %1757 = vmatprep.subr.mxu0 0.0
  %1758 = vmatpush2.msra.mxu0 0.0
  %1759 = vmatprep.subr.mxu0 0.0
  %1760 = vmatpush2.msra.mxu0 0.0
  %1761 = vmatprep.subr.mxu0 0.0
  %1762 = vmatpush2.msra.mxu0 0.0
  %1763 = vmatprep.subr.mxu0 0.0
  %1764 = vmatpush2.msra.mxu0 0.0
  %1765 = vmatprep.subr.mxu0 0.0
  %1766 = vmatpush2.msra.mxu0 0.0
  %1767 = vmatprep.subr.mxu0 0.0
  %1768 = vmatpush2.msra.mxu0 0.0
  %1769 = vmatprep.subr.mxu0 0.0
  %1770 = vmatpush2.msra.mxu0 0.0
  %1771 = vmatprep.mubr.f32.mxu0 0.0
  %v1772 = vand.u32 %v1432, 4294901760
  %v1773 = vsub.f32 %v1432, %v1772
  %1774 = vmatmul.mubr.f32.gmra.mxu0 %v1773
  %v1775 = vpop.f32.mrf.mxu0
  %v1776 = vadd.f32 %v1672, %v1775
  %v1777 = vpop.f32.mrf.mxu0
  %1778 = vdwg.mxu0
  %1779 = vmatprep.subr.mxu0 0.0
  %v1780 = vand.u32 %v1431, 4294901760
  %1781 = vmatpush1.msra.mxu0 %v1780
  %1782 = vmatprep.subr.mxu0 0.0
  %v1783 = vand.u32 %v1430, 4294901760
  %1784 = vmatpush1.msra.mxu0 %v1783
  %1785 = vmatprep.subr.mxu0 0.0
  %v1786 = vand.u32 %v1429, 4294901760
  %1787 = vmatpush1.msra.mxu0 %v1786
  %1788 = vmatprep.subr.mxu0 0.0
  %v1789 = vand.u32 %v1428, 4294901760
  %1790 = vmatpush1.msra.mxu0 %v1789
  %1791 = vmatprep.subr.mxu0 0.0
  %v1792 = vand.u32 %v1427, 4294901760
  %1793 = vmatpush1.msra.mxu0 %v1792
  %1794 = vmatprep.subr.mxu0 0.0
  %v1795 = vand.u32 %v1426, 4294901760
  %1796 = vmatpush1.msra.mxu0 %v1795
  %1797 = vmatprep.subr.mxu0 0.0
  %v1798 = vand.u32 %v1425, 4294901760
  %1799 = vmatpush1.msra.mxu0 %v1798
  %1800 = vmatprep.subr.mxu0 0.0
  %v1801 = vand.u32 %v1424, 4294901760
  %1802 = vmatpush1.msra.mxu0 %v1801
  %1803 = vmatprep.subr.mxu0 0.0
  %v1804 = vand.u32 %v1423, 4294901760
  %1805 = vmatpush1.msra.mxu0 %v1804
  %1806 = vmatprep.subr.mxu0 0.0
  %v1807 = vand.u32 %v1422, 4294901760
  %1808 = vmatpush1.msra.mxu0 %v1807
  %1809 = vmatprep.subr.mxu0 0.0
  %v1810 = vand.u32 %v1421, 4294901760
  %1811 = vmatpush1.msra.mxu0 %v1810
  %1812 = vmatprep.subr.mxu0 0.0
  %v1813 = vand.u32 %v1420, 4294901760
  %1814 = vmatpush1.msra.mxu0 %v1813
  %1815 = vmatprep.subr.mxu0 0.0
  %v1816 = vand.u32 %v1419, 4294901760
  %1817 = vmatpush1.msra.mxu0 %v1816
  %1818 = vmatprep.subr.mxu0 0.0
  %v1819 = vand.u32 %v1418, 4294901760
  %1820 = vmatpush1.msra.mxu0 %v1819
  %1821 = vmatprep.subr.mxu0 0.0
  %v1822 = vand.u32 %v1417, 4294901760
  %1823 = vmatpush1.msra.mxu0 %v1822
  %1824 = vmatprep.subr.mxu0 0.0
  %v1825 = vand.u32 %v1416, 4294901760
  %1826 = vmatpush1.msra.mxu0 %v1825
  %1827 = vmatprep.subr.mxu0 0.0
  %1828 = vmatpush2.msra.mxu0 0.0
  %1829 = vmatprep.subr.mxu0 0.0
  %1830 = vmatpush2.msra.mxu0 0.0
  %1831 = vmatprep.subr.mxu0 0.0
  %1832 = vmatpush2.msra.mxu0 0.0
  %1833 = vmatprep.subr.mxu0 0.0
  %1834 = vmatpush2.msra.mxu0 0.0
  %1835 = vmatprep.subr.mxu0 0.0
  %1836 = vmatpush2.msra.mxu0 0.0
  %1837 = vmatprep.subr.mxu0 0.0
  %1838 = vmatpush2.msra.mxu0 0.0
  %1839 = vmatprep.subr.mxu0 0.0
  %1840 = vmatpush2.msra.mxu0 0.0
  %1841 = vmatprep.subr.mxu0 0.0
  %1842 = vmatpush2.msra.mxu0 0.0
  %1843 = vmatprep.subr.mxu0 0.0
  %1844 = vmatpush2.msra.mxu0 0.0
  %1845 = vmatprep.subr.mxu0 0.0
  %1846 = vmatpush2.msra.mxu0 0.0
  %1847 = vmatprep.subr.mxu0 0.0
  %1848 = vmatpush2.msra.mxu0 0.0
  %1849 = vmatprep.subr.mxu0 0.0
  %1850 = vmatpush2.msra.mxu0 0.0
  %1851 = vmatprep.subr.mxu0 0.0
  %1852 = vmatpush2.msra.mxu0 0.0
  %1853 = vmatprep.subr.mxu0 0.0
  %1854 = vmatpush2.msra.mxu0 0.0
  %1855 = vmatprep.subr.mxu0 0.0
  %1856 = vmatpush2.msra.mxu0 0.0
  %1857 = vmatprep.subr.mxu0 0.0
  %1858 = vmatpush2.msra.mxu0 0.0
  %1859 = vmatprep.mubr.f32.mxu0 0.0
  %v1860 = vand.u32 %v1432, 4294901760
  %v1861 = vsub.f32 %v1432, %v1860
  %v1862 = vand.u32 %v1861, 4294901760
  %1863 = vmatmul.mubr.f32.gmra.mxu0 %v1862
  %v1864 = vpop.f32.mrf.mxu0
  %v1865 = vadd.f32 %v1776, %v1864
  %v1866 = vpop.f32.mrf.mxu0
  %1867 = vdwg.mxu0
  %1868 = vmatprep.subr.mxu0 0.0
  %v1869 = vand.u32 %v1431, 4294901760
  %v1870 = vsub.f32 %v1431, %v1869
  %v1871 = vand.u32 %v1870, 4294901760
  %1872 = vmatpush1.msra.mxu0 %v1871
  %1873 = vmatprep.subr.mxu0 0.0
  %v1874 = vand.u32 %v1430, 4294901760
  %v1875 = vsub.f32 %v1430, %v1874
  %v1876 = vand.u32 %v1875, 4294901760
  %1877 = vmatpush1.msra.mxu0 %v1876
  %1878 = vmatprep.subr.mxu0 0.0
  %v1879 = vand.u32 %v1429, 4294901760
  %v1880 = vsub.f32 %v1429, %v1879
  %v1881 = vand.u32 %v1880, 4294901760
  %1882 = vmatpush1.msra.mxu0 %v1881
  %1883 = vmatprep.subr.mxu0 0.0
  %v1884 = vand.u32 %v1428, 4294901760
  %v1885 = vsub.f32 %v1428, %v1884
  %v1886 = vand.u32 %v1885, 4294901760
  %1887 = vmatpush1.msra.mxu0 %v1886
  %1888 = vmatprep.subr.mxu0 0.0
  %v1889 = vand.u32 %v1427, 4294901760
  %v1890 = vsub.f32 %v1427, %v1889
  %v1891 = vand.u32 %v1890, 4294901760
  %1892 = vmatpush1.msra.mxu0 %v1891
  %1893 = vmatprep.subr.mxu0 0.0
  %v1894 = vand.u32 %v1426, 4294901760
  %v1895 = vsub.f32 %v1426, %v1894
  %v1896 = vand.u32 %v1895, 4294901760
  %1897 = vmatpush1.msra.mxu0 %v1896
  %1898 = vmatprep.subr.mxu0 0.0
  %v1899 = vand.u32 %v1425, 4294901760
  %v1900 = vsub.f32 %v1425, %v1899
  %v1901 = vand.u32 %v1900, 4294901760
  %1902 = vmatpush1.msra.mxu0 %v1901
  %1903 = vmatprep.subr.mxu0 0.0
  %v1904 = vand.u32 %v1424, 4294901760
  %v1905 = vsub.f32 %v1424, %v1904
  %v1906 = vand.u32 %v1905, 4294901760
  %1907 = vmatpush1.msra.mxu0 %v1906
  %1908 = vmatprep.subr.mxu0 0.0
  %v1909 = vand.u32 %v1423, 4294901760
  %v1910 = vsub.f32 %v1423, %v1909
  %v1911 = vand.u32 %v1910, 4294901760
  %1912 = vmatpush1.msra.mxu0 %v1911
  %1913 = vmatprep.subr.mxu0 0.0
  %v1914 = vand.u32 %v1422, 4294901760
  %v1915 = vsub.f32 %v1422, %v1914
  %v1916 = vand.u32 %v1915, 4294901760
  %1917 = vmatpush1.msra.mxu0 %v1916
  %1918 = vmatprep.subr.mxu0 0.0
  %v1919 = vand.u32 %v1421, 4294901760
  %v1920 = vsub.f32 %v1421, %v1919
  %v1921 = vand.u32 %v1920, 4294901760
  %1922 = vmatpush1.msra.mxu0 %v1921
  %1923 = vmatprep.subr.mxu0 0.0
  %v1924 = vand.u32 %v1420, 4294901760
  %v1925 = vsub.f32 %v1420, %v1924
  %v1926 = vand.u32 %v1925, 4294901760
  %1927 = vmatpush1.msra.mxu0 %v1926
  %1928 = vmatprep.subr.mxu0 0.0
  %v1929 = vand.u32 %v1419, 4294901760
  %v1930 = vsub.f32 %v1419, %v1929
  %v1931 = vand.u32 %v1930, 4294901760
  %1932 = vmatpush1.msra.mxu0 %v1931
  %1933 = vmatprep.subr.mxu0 0.0
  %v1934 = vand.u32 %v1418, 4294901760
  %v1935 = vsub.f32 %v1418, %v1934
  %v1936 = vand.u32 %v1935, 4294901760
  %1937 = vmatpush1.msra.mxu0 %v1936
  %1938 = vmatprep.subr.mxu0 0.0
  %v1939 = vand.u32 %v1417, 4294901760
  %v1940 = vsub.f32 %v1417, %v1939
  %v1941 = vand.u32 %v1940, 4294901760
  %1942 = vmatpush1.msra.mxu0 %v1941
  %1943 = vmatprep.subr.mxu0 0.0
  %v1944 = vand.u32 %v1416, 4294901760
  %v1945 = vsub.f32 %v1416, %v1944
  %v1946 = vand.u32 %v1945, 4294901760
  %1947 = vmatpush1.msra.mxu0 %v1946
  %1948 = vmatprep.subr.mxu0 0.0
  %1949 = vmatpush2.msra.mxu0 0.0
  %1950 = vmatprep.subr.mxu0 0.0
  %1951 = vmatpush2.msra.mxu0 0.0
  %1952 = vmatprep.subr.mxu0 0.0
  %1953 = vmatpush2.msra.mxu0 0.0
  %1954 = vmatprep.subr.mxu0 0.0
  %1955 = vmatpush2.msra.mxu0 0.0
  %1956 = vmatprep.subr.mxu0 0.0
  %1957 = vmatpush2.msra.mxu0 0.0
  %1958 = vmatprep.subr.mxu0 0.0
  %1959 = vmatpush2.msra.mxu0 0.0
  %1960 = vmatprep.subr.mxu0 0.0
  %1961 = vmatpush2.msra.mxu0 0.0
  %1962 = vmatprep.subr.mxu0 0.0
  %1963 = vmatpush2.msra.mxu0 0.0
  %1964 = vmatprep.subr.mxu0 0.0
  %1965 = vmatpush2.msra.mxu0 0.0
  %1966 = vmatprep.subr.mxu0 0.0
  %1967 = vmatpush2.msra.mxu0 0.0
  %1968 = vmatprep.subr.mxu0 0.0
  %1969 = vmatpush2.msra.mxu0 0.0
  %1970 = vmatprep.subr.mxu0 0.0
  %1971 = vmatpush2.msra.mxu0 0.0
  %1972 = vmatprep.subr.mxu0 0.0
  %1973 = vmatpush2.msra.mxu0 0.0
  %1974 = vmatprep.subr.mxu0 0.0
  %1975 = vmatpush2.msra.mxu0 0.0
  %1976 = vmatprep.subr.mxu0 0.0
  %1977 = vmatpush2.msra.mxu0 0.0
  %1978 = vmatprep.subr.mxu0 0.0
  %1979 = vmatpush2.msra.mxu0 0.0
  %1980 = vmatprep.mubr.f32.mxu0 0.0
  %v1981 = vand.u32 %v1432, 4294901760
  %1982 = vmatmul.mubr.f32.gmra.mxu0 %v1981
  %v1983 = vpop.f32.mrf.mxu0
  %v1984 = vadd.f32 %v1865, %v1983
  %v1985 = vpop.f32.mrf.mxu0
  %1986 = vdwg.mxu0
  %1987 = vmatprep.subr.mxu0 0.0
  %v1988 = vand.u32 %v1431, 4294901760
  %1989 = vmatpush1.msra.mxu0 %v1988
  %1990 = vmatprep.subr.mxu0 0.0
  %v1991 = vand.u32 %v1430, 4294901760
  %1992 = vmatpush1.msra.mxu0 %v1991
  %1993 = vmatprep.subr.mxu0 0.0
  %v1994 = vand.u32 %v1429, 4294901760
  %1995 = vmatpush1.msra.mxu0 %v1994
  %1996 = vmatprep.subr.mxu0 0.0
  %v1997 = vand.u32 %v1428, 4294901760
  %1998 = vmatpush1.msra.mxu0 %v1997
  %1999 = vmatprep.subr.mxu0 0.0
  %v2000 = vand.u32 %v1427, 4294901760
  %2001 = vmatpush1.msra.mxu0 %v2000
  %2002 = vmatprep.subr.mxu0 0.0
  %v2003 = vand.u32 %v1426, 4294901760
  %2004 = vmatpush1.msra.mxu0 %v2003
  %2005 = vmatprep.subr.mxu0 0.0
  %v2006 = vand.u32 %v1425, 4294901760
  %2007 = vmatpush1.msra.mxu0 %v2006
  %2008 = vmatprep.subr.mxu0 0.0
  %v2009 = vand.u32 %v1424, 4294901760
  %2010 = vmatpush1.msra.mxu0 %v2009
  %2011 = vmatprep.subr.mxu0 0.0
  %v2012 = vand.u32 %v1423, 4294901760
  %2013 = vmatpush1.msra.mxu0 %v2012
  %2014 = vmatprep.subr.mxu0 0.0
  %v2015 = vand.u32 %v1422, 4294901760
  %2016 = vmatpush1.msra.mxu0 %v2015
  %2017 = vmatprep.subr.mxu0 0.0
  %v2018 = vand.u32 %v1421, 4294901760
  %2019 = vmatpush1.msra.mxu0 %v2018
  %2020 = vmatprep.subr.mxu0 0.0
  %v2021 = vand.u32 %v1420, 4294901760
  %2022 = vmatpush1.msra.mxu0 %v2021
  %2023 = vmatprep.subr.mxu0 0.0
  %v2024 = vand.u32 %v1419, 4294901760
  %2025 = vmatpush1.msra.mxu0 %v2024
  %2026 = vmatprep.subr.mxu0 0.0
  %v2027 = vand.u32 %v1418, 4294901760
  %2028 = vmatpush1.msra.mxu0 %v2027
  %2029 = vmatprep.subr.mxu0 0.0
  %v2030 = vand.u32 %v1417, 4294901760
  %2031 = vmatpush1.msra.mxu0 %v2030
  %2032 = vmatprep.subr.mxu0 0.0
  %v2033 = vand.u32 %v1416, 4294901760
  %2034 = vmatpush1.msra.mxu0 %v2033
  %2035 = vmatprep.subr.mxu0 0.0
  %2036 = vmatpush2.msra.mxu0 0.0
  %2037 = vmatprep.subr.mxu0 0.0
  %2038 = vmatpush2.msra.mxu0 0.0
  %2039 = vmatprep.subr.mxu0 0.0
  %2040 = vmatpush2.msra.mxu0 0.0
  %2041 = vmatprep.subr.mxu0 0.0
  %2042 = vmatpush2.msra.mxu0 0.0
  %2043 = vmatprep.subr.mxu0 0.0
  %2044 = vmatpush2.msra.mxu0 0.0
  %2045 = vmatprep.subr.mxu0 0.0
  %2046 = vmatpush2.msra.mxu0 0.0
  %2047 = vmatprep.subr.mxu0 0.0
  %2048 = vmatpush2.msra.mxu0 0.0
  %2049 = vmatprep.subr.mxu0 0.0
  %2050 = vmatpush2.msra.mxu0 0.0
  %2051 = vmatprep.subr.mxu0 0.0
  %2052 = vmatpush2.msra.mxu0 0.0
  %2053 = vmatprep.subr.mxu0 0.0
  %2054 = vmatpush2.msra.mxu0 0.0
  %2055 = vmatprep.subr.mxu0 0.0
  %2056 = vmatpush2.msra.mxu0 0.0
  %2057 = vmatprep.subr.mxu0 0.0
  %2058 = vmatpush2.msra.mxu0 0.0
  %2059 = vmatprep.subr.mxu0 0.0
  %2060 = vmatpush2.msra.mxu0 0.0
  %2061 = vmatprep.subr.mxu0 0.0
  %2062 = vmatpush2.msra.mxu0 0.0
  %2063 = vmatprep.subr.mxu0 0.0
  %2064 = vmatpush2.msra.mxu0 0.0
  %2065 = vmatprep.subr.mxu0 0.0
  %2066 = vmatpush2.msra.mxu0 0.0
  %2067 = vmatprep.mubr.f32.mxu0 0.0
  %v2068 = vand.u32 %v1432, 4294901760
  %2069 = vmatmul.mubr.f32.gmra.mxu0 %v2068
  %v2070 = vpop.f32.mrf.mxu0
  %v2071 = vadd.f32 %v1984, %v2070
  %v2072 = vpop.f32.mrf.mxu0
  %2073 = vdwg.mxu0
  %v2074 = vmul.f32 %v1416, %v1416
  %v2075 = vmul.f32 %v1417, %v1417
  %v2076 = vmul.f32 %v1418, %v1418
  %v2077 = vmul.f32 %v1419, %v1419
  %v2078 = vmul.f32 %v1420, %v1420
  %v2079 = vmul.f32 %v1421, %v1421
  %v2080 = vmul.f32 %v1422, %v1422
  %v2081 = vmul.f32 %v1423, %v1423
  %v2082 = vmul.f32 %v1424, %v1424
  %v2083 = vmul.f32 %v1425, %v1425
  %v2084 = vmul.f32 %v1426, %v1426
  %v2085 = vmul.f32 %v1427, %v1427
  %v2086 = vmul.f32 %v1428, %v1428
  %v2087 = vmul.f32 %v1429, %v1429
  %v2088 = vmul.f32 %v1430, %v1430
  %v2089 = vmul.f32 %v1431, %v1431
  %v2090 = vadd.f32 %v2074, %v2075
  %v2091 = vadd.f32 %v2090, %v2076
  %v2092 = vadd.f32 %v2091, %v2077
  %v2093 = vadd.f32 %v2092, %v2078
  %v2094 = vadd.f32 %v2093, %v2079
  %v2095 = vadd.f32 %v2094, %v2080
  %v2096 = vadd.f32 %v2095, %v2081
  %v2097 = vadd.f32 %v2096, %v2082
  %v2098 = vadd.f32 %v2097, %v2083
  %v2099 = vadd.f32 %v2098, %v2084
  %v2100 = vadd.f32 %v2099, %v2085
  %v2101 = vadd.f32 %v2100, %v2086
  %v2102 = vadd.f32 %v2101, %v2087
  %v2103 = vadd.f32 %v2102, %v2088
  %v2104 = vadd.f32 %v2103, %v2089
  %v2105 = vrot.slane %v2104, 4
  %v2106 = vadd.f32 %v2104, %v2105
  %v2107 = vrot.slane %v2106, 2
  %v2108 = vadd.f32 %v2106, %v2107
  %v2109 = vrot.slane %v2108, 1
  %v2110 = vadd.f32 %v2108, %v2109
  %v2111 = vmul.f32 %v2071, 0.0078125
  %v2112 = vmul.f32 %v2110, 0.0078125
  %v2113 = vmul.f32 %v2111, %v2111
  %v2114 = vsub.f32 %v2112, %v2113
  %v2115 = vadd.f32 %v2114, 1e-05
  %v2116 = vrsqrt.pop %v2115
  %v2118 = vrot.slane %v2116, 7
  %v2120 = vmul.f32 %v2071, %v2118
  %s2121 = sld [smem:[#allocation2]]
  %v2122 = vstv %s2121
  %v2123 = vadd.f32 %v2120, %v2122
  %2124 = vst [vmem:[%s5 - $0x1] sm:$0x2] %v2123
  // Predicated region
  $region22: #{_distance_head_mlp_impl.1} parent=0 // pred_check
    _
  $region23: #{_distance_head_mlp_impl.1} parent=0 // pred_check_branch
    %2126 = sbr.rel (0) target = $region25
  $region24: #{_distance_head_mlp_impl.1} parent=0 // pred_region
    _
  $region25: #{_distance_head_mlp_impl.1} parent=0 // pred_fallthru
    _
  // Predicated region
  $region26: #{_distance_head_mlp_impl.1} parent=0 // pred_check
    _
  $region27: #{_distance_head_mlp_impl.1} parent=0 // pred_check_branch
    %2128 = sbr.rel (0) target = $region29
  $region28: #{_distance_head_mlp_impl.1} parent=0 // pred_region
    _
  $region29: #{_distance_head_mlp_impl.1} parent=0 // pred_fallthru
    _

</llo_original>
